<compile_context>
chip_gen: v6e
topology: v6e:2x2x1
jax: 0.10.0
libtpu: 0.0.40
codegen_flags: <defaults>
</compile_context>

<pallas_src>
import functools

import jax
import jax.numpy as jnp
from jax import lax
from jax.experimental import pallas as pl
from jax.experimental.pallas import tpu as pltpu

KERNEL_SIZE = 7
PAD = KERNEL_SIZE // 2


# ---------------------------------------------------------------------------
# Shift helpers: value[i + d] with zero fill, as one static slice + concat.
# ---------------------------------------------------------------------------
def _shift_rows_zero(a, di):
    """out[i, :] = a[i + di, :] (zero outside), di is a static int."""
    if di == 0:
        return a
    h, w = a.shape
    z = jnp.zeros((abs(di), w), a.dtype)
    if di > 0:
        return jnp.concatenate([a[di:, :], z], axis=0)
    return jnp.concatenate([z, a[:h + di, :]], axis=0)


def _shift_cols_zero(a, dj):
    """out[:, j] = a[:, j + dj] (zero outside), dj is a static int."""
    if dj == 0:
        return a
    h, w = a.shape
    z = jnp.zeros((h, abs(dj)), a.dtype)
    if dj > 0:
        return jnp.concatenate([a[:, dj:], z], axis=1)
    return jnp.concatenate([z, a[:, :w + dj]], axis=1)


def _conv_accumulate(acc, src, ch, w_ref, kernel_size, pad):
    """acc += cross-correlation of `src` with w[ch] (KxK, zero padding).

    The 7 column-shifted copies of `src` are built once; the per-kernel-row
    weighted partial sum gets a single row shift, and the conv weights are
    scalar reads from SMEM (broadcast from sregs for free).
    Channels (avg, max) are processed sequentially to keep the live slab
    count small (no spills).
    """
    h, w = src.shape
    shifted = [_shift_cols_zero(src, kj - pad) for kj in range(kernel_size)]
    for ki in range(kernel_size):
        partial = jnp.zeros((h, w), jnp.float32)
        for kj in range(kernel_size):
            w_s = w_ref[ch, ki * kernel_size + kj]      # scalar read from SMEM
            partial = partial + w_s * shifted[kj]
        acc = acc + _shift_rows_zero(partial, ki - pad)
    return acc


# ---------------------------------------------------------------------------
# Pass 1: channel reduce (sum + max) over C tiles, then 7x7 conv + sigmoid.
# ---------------------------------------------------------------------------
def _attention_map_kernel(x_ref, w_ref, att_ref, sum_sc, max_sc, *,
                          c_total, kernel_size, pad):
    ci = pl.program_id(1)
    nc = pl.num_programs(1)

    @pl.when(ci == 0)
    def _():
        sum_sc[...] = jnp.zeros(sum_sc.shape, sum_sc.dtype)
        max_sc[...] = jnp.full(max_sc.shape, -jnp.inf, max_sc.dtype)

    # Channel-tile reduction (elementwise over the leading axis -> pure VPU).
    xb = x_ref[0].astype(jnp.float32)                    # (Ct, H, W)
    sum_sc[...] = sum_sc[...] + jnp.sum(xb, axis=0)
    max_sc[...] = jnp.maximum(max_sc[...], jnp.max(xb, axis=0))

    @pl.when(ci == nc - 1)
    def _():
        h, w = sum_sc.shape
        avg = sum_sc[...] * (1.0 / c_total)              # channel mean
        mx = max_sc[...]                                 # channel max
        acc = jnp.zeros((h, w), jnp.float32)
        acc = _conv_accumulate(acc, avg, 0, w_ref, kernel_size, pad)
        acc = _conv_accumulate(acc, mx, 1, w_ref, kernel_size, pad)
        att_ref[0] = jax.nn.sigmoid(acc)


# ---------------------------------------------------------------------------
# Pass 2: lane-dense rescale  out[n, c, :] = x[n, c, :] * att[n, :].
# ---------------------------------------------------------------------------
def _apply_kernel(att_ref, x_ref, o_ref):
    att = att_ref[0]                                     # (1, HW) f32
    o_ref[0] = (x_ref[0].astype(jnp.float32) * att).astype(o_ref.dtype)


def _pick_c_tile(c, h, w, itemsize, budget_bytes=1 << 20):
    """Largest channel tile (== C, or a multiple of 8 dividing C) within budget."""
    if c * h * w * itemsize <= budget_bytes:
        return c
    best = None
    for ct in range(8, c, 8):
        if c % ct == 0 and ct * h * w * itemsize <= budget_bytes:
            best = ct
    if best is not None:
        return best
    return 8 if c % 8 == 0 else c


@functools.partial(jax.jit, static_argnames=("c_tile",))
def spatial_attention(x, weight, *, c_tile=None):
    """x: (N, C, H, W); weight: (1, 2, K, K) -> (N, C, H, W)."""
    n, c, h, w = x.shape
    k = weight.shape[-1]
    pad = k // 2
    if c_tile is None:
        c_tile = _pick_c_tile(c, h, w, x.dtype.itemsize)
    assert c % c_tile == 0
    n_ct = c // c_tile
    w_flat = weight.reshape(2, k * k).astype(jnp.float32)   # SMEM-friendly layout
    itemsize = x.dtype.itemsize

    # ---- Pass 1: channel reduce + KxK conv + sigmoid -> (N, H, W) f32 ------
    att = pl.pallas_call(
        functools.partial(_attention_map_kernel, c_total=c,
                          kernel_size=k, pad=pad),
        out_shape=jax.ShapeDtypeStruct((n, h, w), jnp.float32),
        grid=(n, n_ct),
        in_specs=[
            pl.BlockSpec((1, c_tile, h, w), lambda i, j: (i, j, 0, 0)),
            pl.BlockSpec(memory_space=pltpu.MemorySpace.SMEM),  # conv weights
        ],
        out_specs=pl.BlockSpec((1, h, w), lambda i, j: (i, 0, 0)),
        scratch_shapes=[pltpu.VMEM((h, w), jnp.float32),   # running sum
                        pltpu.VMEM((h, w), jnp.float32)],  # running max
        compiler_params=pltpu.CompilerParams(
            dimension_semantics=("parallel", "arbitrary")),
        cost_estimate=pl.CostEstimate(
            flops=2 * n * c * h * w + n * 4 * k * k * h * w,
            transcendentals=n * h * w,
            bytes_accessed=n * c * h * w * itemsize + n * h * w * 4),
    )(x, w_flat)

    # ---- Pass 2: lane-dense rescale  out = x * att -------------------------
    hw = h * w
    x_flat = x.reshape(n, c, hw)
    att_flat = att.reshape(n, 1, hw)
    out_flat = pl.pallas_call(
        _apply_kernel,
        out_shape=jax.ShapeDtypeStruct((n, c, hw), x.dtype),
        grid=(n, n_ct),
        in_specs=[
            pl.BlockSpec((1, 1, hw), lambda i, j: (i, 0, 0)),
            pl.BlockSpec((1, c_tile, hw), lambda i, j: (i, j, 0)),
        ],
        out_specs=pl.BlockSpec((1, c_tile, hw), lambda i, j: (i, j, 0)),
        compiler_params=pltpu.CompilerParams(
            dimension_semantics=("parallel", "parallel")),
        cost_estimate=pl.CostEstimate(
            flops=n * c * hw,
            transcendentals=0,
            bytes_accessed=2 * n * c * hw * itemsize + n * hw * 4),
    )(att_flat, x_flat)
    return out_flat.reshape(n, c, h, w)


def spatial_attention_ref(x, weight):
    """Pure-JAX reference mirroring the PyTorch forward."""
    pad = weight.shape[-1] // 2
    avg = jnp.mean(x, axis=1, keepdims=True)
    mx = jnp.max(x, axis=1, keepdims=True)
    cat = jnp.concatenate([avg, mx], axis=1)              # (N, 2, H, W)
    out = lax.conv_general_dilated(
        cat, weight, window_strides=(1, 1),
        padding=[(pad, pad), (pad, pad)],
        dimension_numbers=("NCHW", "OIHW", "NCHW"))
    return x * jax.nn.sigmoid(out)


if __name__ == "__main__":
    key = jax.random.PRNGKey(0)
    kx, kw, kx2 = jax.random.split(key, 3)

    # Conv2d default init: uniform +- 1/sqrt(fan_in), fan_in = 2*7*7.
    fan_in = 2 * KERNEL_SIZE * KERNEL_SIZE
    bound = 1.0 / (fan_in ** 0.5)
    weight = jax.random.uniform(
        kw, (1, 2, KERNEL_SIZE, KERNEL_SIZE),
        minval=-bound, maxval=bound, dtype=jnp.float32)

    # Test 1: small shape from the module's forward (single C tile).
    N, C, H, W = 2, 4, 16, 16
    x = jax.random.normal(kx, (N, C, H, W), dtype=jnp.float32)
    out = jax.block_until_ready(spatial_attention(x, weight))
    ref = spatial_attention_ref(x, weight)
    assert out.shape == (N, C, H, W)
    assert jnp.allclose(out, ref, atol=1e-5, rtol=1e-5), (
        f"max abs diff {jnp.max(jnp.abs(out - ref))}")

    # Test 2: exercise the multi-C-tile reduction path (C tiled by 8).
    N2, C2, H2, W2 = 2, 16, 16, 16
    x2 = jax.random.normal(kx2, (N2, C2, H2, W2), dtype=jnp.float32)
    out2 = jax.block_until_ready(spatial_attention(x2, weight, c_tile=8))
    ref2 = spatial_attention_ref(x2, weight)
    assert out2.shape == (N2, C2, H2, W2)
    assert jnp.allclose(out2, ref2, atol=1e-5, rtol=1e-5), (
        f"max abs diff {jnp.max(jnp.abs(out2 - ref2))}")

    print("KERNEL_OK")
</pallas_src>

<mosaic_0001>
module attributes {stable_mosaic.version = 11 : i64} {
  func.func @_attention_map_kernel(%arg0: i32, %arg1: i32, %arg2: memref<1x4x16x16xf32, #tpu.memory_space<vmem>>, %arg3: memref<2x49xf32, #tpu.memory_space<smem>>, %arg4: memref<1x16x16xf32, #tpu.memory_space<vmem>>, %arg5: memref<16x16xf32, #tpu.memory_space<vmem>>, %arg6: memref<16x16xf32, #tpu.memory_space<vmem>>) attributes {dimension_semantics = [#tpu.dimension_semantics<parallel>, #tpu.dimension_semantics<arbitrary>], iteration_bounds = array<i64: 2, 1>, scalar_prefetch = 0 : i64, scratch_operands = 2 : i64, tpu.core_type = #tpu.core_type<tc>, window_params = [{transform_indices = @transform_0, window_bounds = array<i64: 1, 4, 16, 16>}, {transform_indices = @transform_1, window_bounds = array<i64: 2, 49>}, {transform_indices = @transform_2, window_bounds = array<i64: 1, 16, 16>}]} {
    %c0_i32 = arith.constant 0 : i32
    %0 = arith.cmpi eq, %arg1, %c0_i32 : i32
    %1 = arith.extui %0 : i1 to i32
    %c0_i32_0 = arith.constant 0 : i32
    %2 = arith.cmpi ne, %1, %c0_i32_0 : i32
    scf.if %2 {
      %cst_15 = arith.constant 0.000000e+00 : f32
      %16 = vector.broadcast %cst_15 : f32 to vector<16x16xf32>
      %c0_16 = arith.constant 0 : index
      %c0_17 = arith.constant 0 : index
      %17 = vector.load %arg5[%c0_16, %c0_17] : memref<16x16xf32, #tpu.memory_space<vmem>>, vector<16x16xf32>
      tpu.vector_store %arg5[%c0_16, %c0_17], %16 {strides = array<i32>} : memref<16x16xf32, #tpu.memory_space<vmem>>, vector<16x16xf32>,
      %cst_18 = arith.constant 0xFF800000 : f32
      %18 = vector.broadcast %cst_18 : f32 to vector<16x16xf32>
      %c0_19 = arith.constant 0 : index
      %c0_20 = arith.constant 0 : index
      %19 = vector.load %arg6[%c0_19, %c0_20] : memref<16x16xf32, #tpu.memory_space<vmem>>, vector<16x16xf32>
      tpu.vector_store %arg6[%c0_19, %c0_20], %18 {strides = array<i32>} : memref<16x16xf32, #tpu.memory_space<vmem>>, vector<16x16xf32>,
    } else {
    }
    %c0 = arith.constant 0 : index
    %c0_1 = arith.constant 0 : index
    %c0_2 = arith.constant 0 : index
    %c0_3 = arith.constant 0 : index
    %3 = vector.load %arg2[%c0, %c0_1, %c0_2, %c0_3] : memref<1x4x16x16xf32, #tpu.memory_space<vmem>>, vector<1x4x16x16xf32>
    %4 = vector.shape_cast %3 : vector<1x4x16x16xf32> to vector<4x16x16xf32>
    %c0_4 = arith.constant 0 : index
    %c0_5 = arith.constant 0 : index
    %5 = vector.load %arg5[%c0_4, %c0_5] : memref<16x16xf32, #tpu.memory_space<vmem>>, vector<16x16xf32>
    %cst = arith.constant dense<0.000000e+00> : vector<16x16xf32>
    %6 = vector.multi_reduction <add>, %4, %cst [0] : vector<4x16x16xf32> to vector<16x16xf32>
    %7 = arith.addf %5, %6 : vector<16x16xf32>
    %c0_6 = arith.constant 0 : index
    %c0_7 = arith.constant 0 : index
    %8 = vector.load %arg5[%c0_6, %c0_7] : memref<16x16xf32, #tpu.memory_space<vmem>>, vector<16x16xf32>
    tpu.vector_store %arg5[%c0_6, %c0_7], %7 {strides = array<i32>} : memref<16x16xf32, #tpu.memory_space<vmem>>, vector<16x16xf32>,
    %c0_8 = arith.constant 0 : index
    %c0_9 = arith.constant 0 : index
    %9 = vector.load %arg6[%c0_8, %c0_9] : memref<16x16xf32, #tpu.memory_space<vmem>>, vector<16x16xf32>
    %cst_10 = arith.constant dense<0xFF800000> : vector<16x16xf32>
    %10 = vector.multi_reduction <maximumf>, %4, %cst_10 [0] : vector<4x16x16xf32> to vector<16x16xf32>
    %11 = arith.maximumf %9, %10 : vector<16x16xf32>
    %c0_11 = arith.constant 0 : index
    %c0_12 = arith.constant 0 : index
    %12 = vector.load %arg6[%c0_11, %c0_12] : memref<16x16xf32, #tpu.memory_space<vmem>>, vector<16x16xf32>
    tpu.vector_store %arg6[%c0_11, %c0_12], %11 {strides = array<i32>} : memref<16x16xf32, #tpu.memory_space<vmem>>, vector<16x16xf32>,
    %c0_i32_13 = arith.constant 0 : i32
    %13 = arith.cmpi eq, %arg1, %c0_i32_13 : i32
    %14 = arith.extui %13 : i1 to i32
    %c0_i32_14 = arith.constant 0 : i32
    %15 = arith.cmpi ne, %14, %c0_i32_14 : i32
    scf.if %15 {
      %c0_15 = arith.constant 0 : index
      %c0_16 = arith.constant 0 : index
      %16 = vector.load %arg5[%c0_15, %c0_16] : memref<16x16xf32, #tpu.memory_space<vmem>>, vector<16x16xf32>
      %cst_17 = arith.constant 2.500000e-01 : f32
      %17 = vector.broadcast %cst_17 : f32 to vector<16x16xf32>
      %18 = arith.mulf %16, %17 : vector<16x16xf32>
      %c0_18 = arith.constant 0 : index
      %c0_19 = arith.constant 0 : index
      %19 = vector.load %arg6[%c0_18, %c0_19] : memref<16x16xf32, #tpu.memory_space<vmem>>, vector<16x16xf32>
      %cst_20 = arith.constant 0.000000e+00 : f32
      %20 = vector.broadcast %cst_20 : f32 to vector<16x16xf32>
      %cst_21 = arith.constant 0.000000e+00 : f32
      %21 = vector.broadcast %cst_21 : f32 to vector<16x3xf32>
      %22 = vector.extract_strided_slice %18 {offsets = [0, 0], sizes = [16, 13], strides = [1, 1]} : vector<16x16xf32> to vector<16x13xf32>
      %23 = tpu.concatenate %21, %22 in 1 : vector<16x3xf32>, vector<16x13xf32> -> vector<16x16xf32>
      %cst_22 = arith.constant 0.000000e+00 : f32
      %24 = vector.broadcast %cst_22 : f32 to vector<16x2xf32>
      %25 = vector.extract_strided_slice %18 {offsets = [0, 0], sizes = [16, 14], strides = [1, 1]} : vector<16x16xf32> to vector<16x14xf32>
      %26 = tpu.concatenate %24, %25 in 1 : vector<16x2xf32>, vector<16x14xf32> -> vector<16x16xf32>
      %cst_23 = arith.constant 0.000000e+00 : f32
      %27 = vector.broadcast %cst_23 : f32 to vector<16x1xf32>
      %28 = vector.extract_strided_slice %18 {offsets = [0, 0], sizes = [16, 15], strides = [1, 1]} : vector<16x16xf32> to vector<16x15xf32>
      %29 = tpu.concatenate %27, %28 in 1 : vector<16x1xf32>, vector<16x15xf32> -> vector<16x16xf32>
      %cst_24 = arith.constant 0.000000e+00 : f32
      %30 = vector.broadcast %cst_24 : f32 to vector<16x1xf32>
      %31 = vector.extract_strided_slice %18 {offsets = [0, 1], sizes = [16, 15], strides = [1, 1]} : vector<16x16xf32> to vector<16x15xf32>
      %32 = tpu.concatenate %31, %30 in 1 : vector<16x15xf32>, vector<16x1xf32> -> vector<16x16xf32>
      %cst_25 = arith.constant 0.000000e+00 : f32
      %33 = vector.broadcast %cst_25 : f32 to vector<16x2xf32>
      %34 = vector.extract_strided_slice %18 {offsets = [0, 2], sizes = [16, 14], strides = [1, 1]} : vector<16x16xf32> to vector<16x14xf32>
      %35 = tpu.concatenate %34, %33 in 1 : vector<16x14xf32>, vector<16x2xf32> -> vector<16x16xf32>
      %cst_26 = arith.constant 0.000000e+00 : f32
      %36 = vector.broadcast %cst_26 : f32 to vector<16x3xf32>
      %37 = vector.extract_strided_slice %18 {offsets = [0, 3], sizes = [16, 13], strides = [1, 1]} : vector<16x16xf32> to vector<16x13xf32>
      %38 = tpu.concatenate %37, %36 in 1 : vector<16x13xf32>, vector<16x3xf32> -> vector<16x16xf32>
      %cst_27 = arith.constant 0.000000e+00 : f32
      %39 = vector.broadcast %cst_27 : f32 to vector<16x16xf32>
      %c0_28 = arith.constant 0 : index
      %c0_29 = arith.constant 0 : index
      %40 = memref.load %arg3[%c0_28, %c0_29] : memref<2x49xf32, #tpu.memory_space<smem>>
      %41 = vector.broadcast %40 : f32 to vector<16x16xf32>
      %42 = arith.mulf %41, %23 : vector<16x16xf32>
      %43 = arith.addf %39, %42 : vector<16x16xf32>
      %c0_30 = arith.constant 0 : index
      %c1 = arith.constant 1 : index
      %44 = memref.load %arg3[%c0_30, %c1] : memref<2x49xf32, #tpu.memory_space<smem>>
      %45 = vector.broadcast %44 : f32 to vector<16x16xf32>
      %46 = arith.mulf %45, %26 : vector<16x16xf32>
      %47 = arith.addf %43, %46 : vector<16x16xf32>
      %c0_31 = arith.constant 0 : index
      %c2 = arith.constant 2 : index
      %48 = memref.load %arg3[%c0_31, %c2] : memref<2x49xf32, #tpu.memory_space<smem>>
      %49 = vector.broadcast %48 : f32 to vector<16x16xf32>
      %50 = arith.mulf %49, %29 : vector<16x16xf32>
      %51 = arith.addf %47, %50 : vector<16x16xf32>
      %c0_32 = arith.constant 0 : index
      %c3 = arith.constant 3 : index
      %52 = memref.load %arg3[%c0_32, %c3] : memref<2x49xf32, #tpu.memory_space<smem>>
      %53 = vector.broadcast %52 : f32 to vector<16x16xf32>
      %54 = arith.mulf %53, %18 : vector<16x16xf32>
      %55 = arith.addf %51, %54 : vector<16x16xf32>
      %c0_33 = arith.constant 0 : index
      %c4 = arith.constant 4 : index
      %56 = memref.load %arg3[%c0_33, %c4] : memref<2x49xf32, #tpu.memory_space<smem>>
      %57 = vector.broadcast %56 : f32 to vector<16x16xf32>
      %58 = arith.mulf %57, %32 : vector<16x16xf32>
      %59 = arith.addf %55, %58 : vector<16x16xf32>
      %c0_34 = arith.constant 0 : index
      %c5 = arith.constant 5 : index
      %60 = memref.load %arg3[%c0_34, %c5] : memref<2x49xf32, #tpu.memory_space<smem>>
      %61 = vector.broadcast %60 : f32 to vector<16x16xf32>
      %62 = arith.mulf %61, %35 : vector<16x16xf32>
      %63 = arith.addf %59, %62 : vector<16x16xf32>
      %c0_35 = arith.constant 0 : index
      %c6 = arith.constant 6 : index
      %64 = memref.load %arg3[%c0_35, %c6] : memref<2x49xf32, #tpu.memory_space<smem>>
      %65 = vector.broadcast %64 : f32 to vector<16x16xf32>
      %66 = arith.mulf %65, %38 : vector<16x16xf32>
      %67 = arith.addf %63, %66 : vector<16x16xf32>
      %cst_36 = arith.constant 0.000000e+00 : f32
      %68 = vector.broadcast %cst_36 : f32 to vector<3x16xf32>
      %69 = vector.extract_strided_slice %67 {offsets = [0, 0], sizes = [13, 16], strides = [1, 1]} : vector<16x16xf32> to vector<13x16xf32>
      %70 = tpu.concatenate %68, %69 in 0 : vector<3x16xf32>, vector<13x16xf32> -> vector<16x16xf32>
      %71 = arith.addf %20, %70 : vector<16x16xf32>
      %cst_37 = arith.constant 0.000000e+00 : f32
      %72 = vector.broadcast %cst_37 : f32 to vector<16x16xf32>
      %c0_38 = arith.constant 0 : index
      %c7 = arith.constant 7 : index
      %73 = memref.load %arg3[%c0_38, %c7] : memref<2x49xf32, #tpu.memory_space<smem>>
      %74 = vector.broadcast %73 : f32 to vector<16x16xf32>
      %75 = arith.mulf %74, %23 : vector<16x16xf32>
      %76 = arith.addf %72, %75 : vector<16x16xf32>
      %c0_39 = arith.constant 0 : index
      %c8 = arith.constant 8 : index
      %77 = memref.load %arg3[%c0_39, %c8] : memref<2x49xf32, #tpu.memory_space<smem>>
      %78 = vector.broadcast %77 : f32 to vector<16x16xf32>
      %79 = arith.mulf %78, %26 : vector<16x16xf32>
      %80 = arith.addf %76, %79 : vector<16x16xf32>
      %c0_40 = arith.constant 0 : index
      %c9 = arith.constant 9 : index
      %81 = memref.load %arg3[%c0_40, %c9] : memref<2x49xf32, #tpu.memory_space<smem>>
      %82 = vector.broadcast %81 : f32 to vector<16x16xf32>
      %83 = arith.mulf %82, %29 : vector<16x16xf32>
      %84 = arith.addf %80, %83 : vector<16x16xf32>
      %c0_41 = arith.constant 0 : index
      %c10 = arith.constant 10 : index
      %85 = memref.load %arg3[%c0_41, %c10] : memref<2x49xf32, #tpu.memory_space<smem>>
      %86 = vector.broadcast %85 : f32 to vector<16x16xf32>
      %87 = arith.mulf %86, %18 : vector<16x16xf32>
      %88 = arith.addf %84, %87 : vector<16x16xf32>
      %c0_42 = arith.constant 0 : index
      %c11 = arith.constant 11 : index
      %89 = memref.load %arg3[%c0_42, %c11] : memref<2x49xf32, #tpu.memory_space<smem>>
      %90 = vector.broadcast %89 : f32 to vector<16x16xf32>
      %91 = arith.mulf %90, %32 : vector<16x16xf32>
      %92 = arith.addf %88, %91 : vector<16x16xf32>
      %c0_43 = arith.constant 0 : index
      %c12 = arith.constant 12 : index
      %93 = memref.load %arg3[%c0_43, %c12] : memref<2x49xf32, #tpu.memory_space<smem>>
      %94 = vector.broadcast %93 : f32 to vector<16x16xf32>
      %95 = arith.mulf %94, %35 : vector<16x16xf32>
      %96 = arith.addf %92, %95 : vector<16x16xf32>
      %c0_44 = arith.constant 0 : index
      %c13 = arith.constant 13 : index
      %97 = memref.load %arg3[%c0_44, %c13] : memref<2x49xf32, #tpu.memory_space<smem>>
      %98 = vector.broadcast %97 : f32 to vector<16x16xf32>
      %99 = arith.mulf %98, %38 : vector<16x16xf32>
      %100 = arith.addf %96, %99 : vector<16x16xf32>
      %cst_45 = arith.constant 0.000000e+00 : f32
      %101 = vector.broadcast %cst_45 : f32 to vector<2x16xf32>
      %102 = vector.extract_strided_slice %100 {offsets = [0, 0], sizes = [14, 16], strides = [1, 1]} : vector<16x16xf32> to vector<14x16xf32>
      %103 = tpu.concatenate %101, %102 in 0 : vector<2x16xf32>, vector<14x16xf32> -> vector<16x16xf32>
      %104 = arith.addf %71, %103 : vector<16x16xf32>
      %cst_46 = arith.constant 0.000000e+00 : f32
      %105 = vector.broadcast %cst_46 : f32 to vector<16x16xf32>
      %c0_47 = arith.constant 0 : index
      %c14 = arith.constant 14 : index
      %106 = memref.load %arg3[%c0_47, %c14] : memref<2x49xf32, #tpu.memory_space<smem>>
      %107 = vector.broadcast %106 : f32 to vector<16x16xf32>
      %108 = arith.mulf %107, %23 : vector<16x16xf32>
      %109 = arith.addf %105, %108 : vector<16x16xf32>
      %c0_48 = arith.constant 0 : index
      %c15 = arith.constant 15 : index
      %110 = memref.load %arg3[%c0_48, %c15] : memref<2x49xf32, #tpu.memory_space<smem>>
      %111 = vector.broadcast %110 : f32 to vector<16x16xf32>
      %112 = arith.mulf %111, %26 : vector<16x16xf32>
      %113 = arith.addf %109, %112 : vector<16x16xf32>
      %c0_49 = arith.constant 0 : index
      %c16 = arith.constant 16 : index
      %114 = memref.load %arg3[%c0_49, %c16] : memref<2x49xf32, #tpu.memory_space<smem>>
      %115 = vector.broadcast %114 : f32 to vector<16x16xf32>
      %116 = arith.mulf %115, %29 : vector<16x16xf32>
      %117 = arith.addf %113, %116 : vector<16x16xf32>
      %c0_50 = arith.constant 0 : index
      %c17 = arith.constant 17 : index
      %118 = memref.load %arg3[%c0_50, %c17] : memref<2x49xf32, #tpu.memory_space<smem>>
      %119 = vector.broadcast %118 : f32 to vector<16x16xf32>
      %120 = arith.mulf %119, %18 : vector<16x16xf32>
      %121 = arith.addf %117, %120 : vector<16x16xf32>
      %c0_51 = arith.constant 0 : index
      %c18 = arith.constant 18 : index
      %122 = memref.load %arg3[%c0_51, %c18] : memref<2x49xf32, #tpu.memory_space<smem>>
      %123 = vector.broadcast %122 : f32 to vector<16x16xf32>
      %124 = arith.mulf %123, %32 : vector<16x16xf32>
      %125 = arith.addf %121, %124 : vector<16x16xf32>
      %c0_52 = arith.constant 0 : index
      %c19 = arith.constant 19 : index
      %126 = memref.load %arg3[%c0_52, %c19] : memref<2x49xf32, #tpu.memory_space<smem>>
      %127 = vector.broadcast %126 : f32 to vector<16x16xf32>
      %128 = arith.mulf %127, %35 : vector<16x16xf32>
      %129 = arith.addf %125, %128 : vector<16x16xf32>
      %c0_53 = arith.constant 0 : index
      %c20 = arith.constant 20 : index
      %130 = memref.load %arg3[%c0_53, %c20] : memref<2x49xf32, #tpu.memory_space<smem>>
      %131 = vector.broadcast %130 : f32 to vector<16x16xf32>
      %132 = arith.mulf %131, %38 : vector<16x16xf32>
      %133 = arith.addf %129, %132 : vector<16x16xf32>
      %cst_54 = arith.constant 0.000000e+00 : f32
      %134 = vector.broadcast %cst_54 : f32 to vector<1x16xf32>
      %135 = vector.extract_strided_slice %133 {offsets = [0, 0], sizes = [15, 16], strides = [1, 1]} : vector<16x16xf32> to vector<15x16xf32>
      %136 = tpu.concatenate %134, %135 in 0 : vector<1x16xf32>, vector<15x16xf32> -> vector<16x16xf32>
      %137 = arith.addf %104, %136 : vector<16x16xf32>
      %cst_55 = arith.constant 0.000000e+00 : f32
      %138 = vector.broadcast %cst_55 : f32 to vector<16x16xf32>
      %c0_56 = arith.constant 0 : index
      %c21 = arith.constant 21 : index
      %139 = memref.load %arg3[%c0_56, %c21] : memref<2x49xf32, #tpu.memory_space<smem>>
      %140 = vector.broadcast %139 : f32 to vector<16x16xf32>
      %141 = arith.mulf %140, %23 : vector<16x16xf32>
      %142 = arith.addf %138, %141 : vector<16x16xf32>
      %c0_57 = arith.constant 0 : index
      %c22 = arith.constant 22 : index
      %143 = memref.load %arg3[%c0_57, %c22] : memref<2x49xf32, #tpu.memory_space<smem>>
      %144 = vector.broadcast %143 : f32 to vector<16x16xf32>
      %145 = arith.mulf %144, %26 : vector<16x16xf32>
      %146 = arith.addf %142, %145 : vector<16x16xf32>
      %c0_58 = arith.constant 0 : index
      %c23 = arith.constant 23 : index
      %147 = memref.load %arg3[%c0_58, %c23] : memref<2x49xf32, #tpu.memory_space<smem>>
      %148 = vector.broadcast %147 : f32 to vector<16x16xf32>
      %149 = arith.mulf %148, %29 : vector<16x16xf32>
      %150 = arith.addf %146, %149 : vector<16x16xf32>
      %c0_59 = arith.constant 0 : index
      %c24 = arith.constant 24 : index
      %151 = memref.load %arg3[%c0_59, %c24] : memref<2x49xf32, #tpu.memory_space<smem>>
      %152 = vector.broadcast %151 : f32 to vector<16x16xf32>
      %153 = arith.mulf %152, %18 : vector<16x16xf32>
      %154 = arith.addf %150, %153 : vector<16x16xf32>
      %c0_60 = arith.constant 0 : index
      %c25 = arith.constant 25 : index
      %155 = memref.load %arg3[%c0_60, %c25] : memref<2x49xf32, #tpu.memory_space<smem>>
      %156 = vector.broadcast %155 : f32 to vector<16x16xf32>
      %157 = arith.mulf %156, %32 : vector<16x16xf32>
      %158 = arith.addf %154, %157 : vector<16x16xf32>
      %c0_61 = arith.constant 0 : index
      %c26 = arith.constant 26 : index
      %159 = memref.load %arg3[%c0_61, %c26] : memref<2x49xf32, #tpu.memory_space<smem>>
      %160 = vector.broadcast %159 : f32 to vector<16x16xf32>
      %161 = arith.mulf %160, %35 : vector<16x16xf32>
      %162 = arith.addf %158, %161 : vector<16x16xf32>
      %c0_62 = arith.constant 0 : index
      %c27 = arith.constant 27 : index
      %163 = memref.load %arg3[%c0_62, %c27] : memref<2x49xf32, #tpu.memory_space<smem>>
      %164 = vector.broadcast %163 : f32 to vector<16x16xf32>
      %165 = arith.mulf %164, %38 : vector<16x16xf32>
      %166 = arith.addf %162, %165 : vector<16x16xf32>
      %167 = arith.addf %137, %166 : vector<16x16xf32>
      %cst_63 = arith.constant 0.000000e+00 : f32
      %168 = vector.broadcast %cst_63 : f32 to vector<16x16xf32>
      %c0_64 = arith.constant 0 : index
      %c28 = arith.constant 28 : index
      %169 = memref.load %arg3[%c0_64, %c28] : memref<2x49xf32, #tpu.memory_space<smem>>
      %170 = vector.broadcast %169 : f32 to vector<16x16xf32>
      %171 = arith.mulf %170, %23 : vector<16x16xf32>
      %172 = arith.addf %168, %171 : vector<16x16xf32>
      %c0_65 = arith.constant 0 : index
      %c29 = arith.constant 29 : index
      %173 = memref.load %arg3[%c0_65, %c29] : memref<2x49xf32, #tpu.memory_space<smem>>
      %174 = vector.broadcast %173 : f32 to vector<16x16xf32>
      %175 = arith.mulf %174, %26 : vector<16x16xf32>
      %176 = arith.addf %172, %175 : vector<16x16xf32>
      %c0_66 = arith.constant 0 : index
      %c30 = arith.constant 30 : index
      %177 = memref.load %arg3[%c0_66, %c30] : memref<2x49xf32, #tpu.memory_space<smem>>
      %178 = vector.broadcast %177 : f32 to vector<16x16xf32>
      %179 = arith.mulf %178, %29 : vector<16x16xf32>
      %180 = arith.addf %176, %179 : vector<16x16xf32>
      %c0_67 = arith.constant 0 : index
      %c31 = arith.constant 31 : index
      %181 = memref.load %arg3[%c0_67, %c31] : memref<2x49xf32, #tpu.memory_space<smem>>
      %182 = vector.broadcast %181 : f32 to vector<16x16xf32>
      %183 = arith.mulf %182, %18 : vector<16x16xf32>
      %184 = arith.addf %180, %183 : vector<16x16xf32>
      %c0_68 = arith.constant 0 : index
      %c32 = arith.constant 32 : index
      %185 = memref.load %arg3[%c0_68, %c32] : memref<2x49xf32, #tpu.memory_space<smem>>
      %186 = vector.broadcast %185 : f32 to vector<16x16xf32>
      %187 = arith.mulf %186, %32 : vector<16x16xf32>
      %188 = arith.addf %184, %187 : vector<16x16xf32>
      %c0_69 = arith.constant 0 : index
      %c33 = arith.constant 33 : index
      %189 = memref.load %arg3[%c0_69, %c33] : memref<2x49xf32, #tpu.memory_space<smem>>
      %190 = vector.broadcast %189 : f32 to vector<16x16xf32>
      %191 = arith.mulf %190, %35 : vector<16x16xf32>
      %192 = arith.addf %188, %191 : vector<16x16xf32>
      %c0_70 = arith.constant 0 : index
      %c34 = arith.constant 34 : index
      %193 = memref.load %arg3[%c0_70, %c34] : memref<2x49xf32, #tpu.memory_space<smem>>
      %194 = vector.broadcast %193 : f32 to vector<16x16xf32>
      %195 = arith.mulf %194, %38 : vector<16x16xf32>
      %196 = arith.addf %192, %195 : vector<16x16xf32>
      %cst_71 = arith.constant 0.000000e+00 : f32
      %197 = vector.broadcast %cst_71 : f32 to vector<1x16xf32>
      %198 = vector.extract_strided_slice %196 {offsets = [1, 0], sizes = [15, 16], strides = [1, 1]} : vector<16x16xf32> to vector<15x16xf32>
      %199 = tpu.concatenate %198, %197 in 0 : vector<15x16xf32>, vector<1x16xf32> -> vector<16x16xf32>
      %200 = arith.addf %167, %199 : vector<16x16xf32>
      %cst_72 = arith.constant 0.000000e+00 : f32
      %201 = vector.broadcast %cst_72 : f32 to vector<16x16xf32>
      %c0_73 = arith.constant 0 : index
      %c35 = arith.constant 35 : index
      %202 = memref.load %arg3[%c0_73, %c35] : memref<2x49xf32, #tpu.memory_space<smem>>
      %203 = vector.broadcast %202 : f32 to vector<16x16xf32>
      %204 = arith.mulf %203, %23 : vector<16x16xf32>
      %205 = arith.addf %201, %204 : vector<16x16xf32>
      %c0_74 = arith.constant 0 : index
      %c36 = arith.constant 36 : index
      %206 = memref.load %arg3[%c0_74, %c36] : memref<2x49xf32, #tpu.memory_space<smem>>
      %207 = vector.broadcast %206 : f32 to vector<16x16xf32>
      %208 = arith.mulf %207, %26 : vector<16x16xf32>
      %209 = arith.addf %205, %208 : vector<16x16xf32>
      %c0_75 = arith.constant 0 : index
      %c37 = arith.constant 37 : index
      %210 = memref.load %arg3[%c0_75, %c37] : memref<2x49xf32, #tpu.memory_space<smem>>
      %211 = vector.broadcast %210 : f32 to vector<16x16xf32>
      %212 = arith.mulf %211, %29 : vector<16x16xf32>
      %213 = arith.addf %209, %212 : vector<16x16xf32>
      %c0_76 = arith.constant 0 : index
      %c38 = arith.constant 38 : index
      %214 = memref.load %arg3[%c0_76, %c38] : memref<2x49xf32, #tpu.memory_space<smem>>
      %215 = vector.broadcast %214 : f32 to vector<16x16xf32>
      %216 = arith.mulf %215, %18 : vector<16x16xf32>
      %217 = arith.addf %213, %216 : vector<16x16xf32>
      %c0_77 = arith.constant 0 : index
      %c39 = arith.constant 39 : index
      %218 = memref.load %arg3[%c0_77, %c39] : memref<2x49xf32, #tpu.memory_space<smem>>
      %219 = vector.broadcast %218 : f32 to vector<16x16xf32>
      %220 = arith.mulf %219, %32 : vector<16x16xf32>
      %221 = arith.addf %217, %220 : vector<16x16xf32>
      %c0_78 = arith.constant 0 : index
      %c40 = arith.constant 40 : index
      %222 = memref.load %arg3[%c0_78, %c40] : memref<2x49xf32, #tpu.memory_space<smem>>
      %223 = vector.broadcast %222 : f32 to vector<16x16xf32>
      %224 = arith.mulf %223, %35 : vector<16x16xf32>
      %225 = arith.addf %221, %224 : vector<16x16xf32>
      %c0_79 = arith.constant 0 : index
      %c41 = arith.constant 41 : index
      %226 = memref.load %arg3[%c0_79, %c41] : memref<2x49xf32, #tpu.memory_space<smem>>
      %227 = vector.broadcast %226 : f32 to vector<16x16xf32>
      %228 = arith.mulf %227, %38 : vector<16x16xf32>
      %229 = arith.addf %225, %228 : vector<16x16xf32>
      %cst_80 = arith.constant 0.000000e+00 : f32
      %230 = vector.broadcast %cst_80 : f32 to vector<2x16xf32>
      %231 = vector.extract_strided_slice %229 {offsets = [2, 0], sizes = [14, 16], strides = [1, 1]} : vector<16x16xf32> to vector<14x16xf32>
      %232 = tpu.concatenate %231, %230 in 0 : vector<14x16xf32>, vector<2x16xf32> -> vector<16x16xf32>
      %233 = arith.addf %200, %232 : vector<16x16xf32>
      %cst_81 = arith.constant 0.000000e+00 : f32
      %234 = vector.broadcast %cst_81 : f32 to vector<16x16xf32>
      %c0_82 = arith.constant 0 : index
      %c42 = arith.constant 42 : index
      %235 = memref.load %arg3[%c0_82, %c42] : memref<2x49xf32, #tpu.memory_space<smem>>
      %236 = vector.broadcast %235 : f32 to vector<16x16xf32>
      %237 = arith.mulf %236, %23 : vector<16x16xf32>
      %238 = arith.addf %234, %237 : vector<16x16xf32>
      %c0_83 = arith.constant 0 : index
      %c43 = arith.constant 43 : index
      %239 = memref.load %arg3[%c0_83, %c43] : memref<2x49xf32, #tpu.memory_space<smem>>
      %240 = vector.broadcast %239 : f32 to vector<16x16xf32>
      %241 = arith.mulf %240, %26 : vector<16x16xf32>
      %242 = arith.addf %238, %241 : vector<16x16xf32>
      %c0_84 = arith.constant 0 : index
      %c44 = arith.constant 44 : index
      %243 = memref.load %arg3[%c0_84, %c44] : memref<2x49xf32, #tpu.memory_space<smem>>
      %244 = vector.broadcast %243 : f32 to vector<16x16xf32>
      %245 = arith.mulf %244, %29 : vector<16x16xf32>
      %246 = arith.addf %242, %245 : vector<16x16xf32>
      %c0_85 = arith.constant 0 : index
      %c45 = arith.constant 45 : index
      %247 = memref.load %arg3[%c0_85, %c45] : memref<2x49xf32, #tpu.memory_space<smem>>
      %248 = vector.broadcast %247 : f32 to vector<16x16xf32>
      %249 = arith.mulf %248, %18 : vector<16x16xf32>
      %250 = arith.addf %246, %249 : vector<16x16xf32>
      %c0_86 = arith.constant 0 : index
      %c46 = arith.constant 46 : index
      %251 = memref.load %arg3[%c0_86, %c46] : memref<2x49xf32, #tpu.memory_space<smem>>
      %252 = vector.broadcast %251 : f32 to vector<16x16xf32>
      %253 = arith.mulf %252, %32 : vector<16x16xf32>
      %254 = arith.addf %250, %253 : vector<16x16xf32>
      %c0_87 = arith.constant 0 : index
      %c47 = arith.constant 47 : index
      %255 = memref.load %arg3[%c0_87, %c47] : memref<2x49xf32, #tpu.memory_space<smem>>
      %256 = vector.broadcast %255 : f32 to vector<16x16xf32>
      %257 = arith.mulf %256, %35 : vector<16x16xf32>
      %258 = arith.addf %254, %257 : vector<16x16xf32>
      %c0_88 = arith.constant 0 : index
      %c48 = arith.constant 48 : index
      %259 = memref.load %arg3[%c0_88, %c48] : memref<2x49xf32, #tpu.memory_space<smem>>
      %260 = vector.broadcast %259 : f32 to vector<16x16xf32>
      %261 = arith.mulf %260, %38 : vector<16x16xf32>
      %262 = arith.addf %258, %261 : vector<16x16xf32>
      %cst_89 = arith.constant 0.000000e+00 : f32
      %263 = vector.broadcast %cst_89 : f32 to vector<3x16xf32>
      %264 = vector.extract_strided_slice %262 {offsets = [3, 0], sizes = [13, 16], strides = [1, 1]} : vector<16x16xf32> to vector<13x16xf32>
      %265 = tpu.concatenate %264, %263 in 0 : vector<13x16xf32>, vector<3x16xf32> -> vector<16x16xf32>
      %266 = arith.addf %233, %265 : vector<16x16xf32>
      %cst_90 = arith.constant 0.000000e+00 : f32
      %267 = vector.broadcast %cst_90 : f32 to vector<16x3xf32>
      %268 = vector.extract_strided_slice %19 {offsets = [0, 0], sizes = [16, 13], strides = [1, 1]} : vector<16x16xf32> to vector<16x13xf32>
      %269 = tpu.concatenate %267, %268 in 1 : vector<16x3xf32>, vector<16x13xf32> -> vector<16x16xf32>
      %cst_91 = arith.constant 0.000000e+00 : f32
      %270 = vector.broadcast %cst_91 : f32 to vector<16x2xf32>
      %271 = vector.extract_strided_slice %19 {offsets = [0, 0], sizes = [16, 14], strides = [1, 1]} : vector<16x16xf32> to vector<16x14xf32>
      %272 = tpu.concatenate %270, %271 in 1 : vector<16x2xf32>, vector<16x14xf32> -> vector<16x16xf32>
      %cst_92 = arith.constant 0.000000e+00 : f32
      %273 = vector.broadcast %cst_92 : f32 to vector<16x1xf32>
      %274 = vector.extract_strided_slice %19 {offsets = [0, 0], sizes = [16, 15], strides = [1, 1]} : vector<16x16xf32> to vector<16x15xf32>
      %275 = tpu.concatenate %273, %274 in 1 : vector<16x1xf32>, vector<16x15xf32> -> vector<16x16xf32>
      %cst_93 = arith.constant 0.000000e+00 : f32
      %276 = vector.broadcast %cst_93 : f32 to vector<16x1xf32>
      %277 = vector.extract_strided_slice %19 {offsets = [0, 1], sizes = [16, 15], strides = [1, 1]} : vector<16x16xf32> to vector<16x15xf32>
      %278 = tpu.concatenate %277, %276 in 1 : vector<16x15xf32>, vector<16x1xf32> -> vector<16x16xf32>
      %cst_94 = arith.constant 0.000000e+00 : f32
      %279 = vector.broadcast %cst_94 : f32 to vector<16x2xf32>
      %280 = vector.extract_strided_slice %19 {offsets = [0, 2], sizes = [16, 14], strides = [1, 1]} : vector<16x16xf32> to vector<16x14xf32>
      %281 = tpu.concatenate %280, %279 in 1 : vector<16x14xf32>, vector<16x2xf32> -> vector<16x16xf32>
      %cst_95 = arith.constant 0.000000e+00 : f32
      %282 = vector.broadcast %cst_95 : f32 to vector<16x3xf32>
      %283 = vector.extract_strided_slice %19 {offsets = [0, 3], sizes = [16, 13], strides = [1, 1]} : vector<16x16xf32> to vector<16x13xf32>
      %284 = tpu.concatenate %283, %282 in 1 : vector<16x13xf32>, vector<16x3xf32> -> vector<16x16xf32>
      %cst_96 = arith.constant 0.000000e+00 : f32
      %285 = vector.broadcast %cst_96 : f32 to vector<16x16xf32>
      %c1_97 = arith.constant 1 : index
      %c0_98 = arith.constant 0 : index
      %286 = memref.load %arg3[%c1_97, %c0_98] : memref<2x49xf32, #tpu.memory_space<smem>>
      %287 = vector.broadcast %286 : f32 to vector<16x16xf32>
      %288 = arith.mulf %287, %269 : vector<16x16xf32>
      %289 = arith.addf %285, %288 : vector<16x16xf32>
      %c1_99 = arith.constant 1 : index
      %c1_100 = arith.constant 1 : index
      %290 = memref.load %arg3[%c1_99, %c1_100] : memref<2x49xf32, #tpu.memory_space<smem>>
      %291 = vector.broadcast %290 : f32 to vector<16x16xf32>
      %292 = arith.mulf %291, %272 : vector<16x16xf32>
      %293 = arith.addf %289, %292 : vector<16x16xf32>
      %c1_101 = arith.constant 1 : index
      %c2_102 = arith.constant 2 : index
      %294 = memref.load %arg3[%c1_101, %c2_102] : memref<2x49xf32, #tpu.memory_space<smem>>
      %295 = vector.broadcast %294 : f32 to vector<16x16xf32>
      %296 = arith.mulf %295, %275 : vector<16x16xf32>
      %297 = arith.addf %293, %296 : vector<16x16xf32>
      %c1_103 = arith.constant 1 : index
      %c3_104 = arith.constant 3 : index
      %298 = memref.load %arg3[%c1_103, %c3_104] : memref<2x49xf32, #tpu.memory_space<smem>>
      %299 = vector.broadcast %298 : f32 to vector<16x16xf32>
      %300 = arith.mulf %299, %19 : vector<16x16xf32>
      %301 = arith.addf %297, %300 : vector<16x16xf32>
      %c1_105 = arith.constant 1 : index
      %c4_106 = arith.constant 4 : index
      %302 = memref.load %arg3[%c1_105, %c4_106] : memref<2x49xf32, #tpu.memory_space<smem>>
      %303 = vector.broadcast %302 : f32 to vector<16x16xf32>
      %304 = arith.mulf %303, %278 : vector<16x16xf32>
      %305 = arith.addf %301, %304 : vector<16x16xf32>
      %c1_107 = arith.constant 1 : index
      %c5_108 = arith.constant 5 : index
      %306 = memref.load %arg3[%c1_107, %c5_108] : memref<2x49xf32, #tpu.memory_space<smem>>
      %307 = vector.broadcast %306 : f32 to vector<16x16xf32>
      %308 = arith.mulf %307, %281 : vector<16x16xf32>
      %309 = arith.addf %305, %308 : vector<16x16xf32>
      %c1_109 = arith.constant 1 : index
      %c6_110 = arith.constant 6 : index
      %310 = memref.load %arg3[%c1_109, %c6_110] : memref<2x49xf32, #tpu.memory_space<smem>>
      %311 = vector.broadcast %310 : f32 to vector<16x16xf32>
      %312 = arith.mulf %311, %284 : vector<16x16xf32>
      %313 = arith.addf %309, %312 : vector<16x16xf32>
      %cst_111 = arith.constant 0.000000e+00 : f32
      %314 = vector.broadcast %cst_111 : f32 to vector<3x16xf32>
      %315 = vector.extract_strided_slice %313 {offsets = [0, 0], sizes = [13, 16], strides = [1, 1]} : vector<16x16xf32> to vector<13x16xf32>
      %316 = tpu.concatenate %314, %315 in 0 : vector<3x16xf32>, vector<13x16xf32> -> vector<16x16xf32>
      %317 = arith.addf %266, %316 : vector<16x16xf32>
      %cst_112 = arith.constant 0.000000e+00 : f32
      %318 = vector.broadcast %cst_112 : f32 to vector<16x16xf32>
      %c1_113 = arith.constant 1 : index
      %c7_114 = arith.constant 7 : index
      %319 = memref.load %arg3[%c1_113, %c7_114] : memref<2x49xf32, #tpu.memory_space<smem>>
      %320 = vector.broadcast %319 : f32 to vector<16x16xf32>
      %321 = arith.mulf %320, %269 : vector<16x16xf32>
      %322 = arith.addf %318, %321 : vector<16x16xf32>
      %c1_115 = arith.constant 1 : index
      %c8_116 = arith.constant 8 : index
      %323 = memref.load %arg3[%c1_115, %c8_116] : memref<2x49xf32, #tpu.memory_space<smem>>
      %324 = vector.broadcast %323 : f32 to vector<16x16xf32>
      %325 = arith.mulf %324, %272 : vector<16x16xf32>
      %326 = arith.addf %322, %325 : vector<16x16xf32>
      %c1_117 = arith.constant 1 : index
      %c9_118 = arith.constant 9 : index
      %327 = memref.load %arg3[%c1_117, %c9_118] : memref<2x49xf32, #tpu.memory_space<smem>>
      %328 = vector.broadcast %327 : f32 to vector<16x16xf32>
      %329 = arith.mulf %328, %275 : vector<16x16xf32>
      %330 = arith.addf %326, %329 : vector<16x16xf32>
      %c1_119 = arith.constant 1 : index
      %c10_120 = arith.constant 10 : index
      %331 = memref.load %arg3[%c1_119, %c10_120] : memref<2x49xf32, #tpu.memory_space<smem>>
      %332 = vector.broadcast %331 : f32 to vector<16x16xf32>
      %333 = arith.mulf %332, %19 : vector<16x16xf32>
      %334 = arith.addf %330, %333 : vector<16x16xf32>
      %c1_121 = arith.constant 1 : index
      %c11_122 = arith.constant 11 : index
      %335 = memref.load %arg3[%c1_121, %c11_122] : memref<2x49xf32, #tpu.memory_space<smem>>
      %336 = vector.broadcast %335 : f32 to vector<16x16xf32>
      %337 = arith.mulf %336, %278 : vector<16x16xf32>
      %338 = arith.addf %334, %337 : vector<16x16xf32>
      %c1_123 = arith.constant 1 : index
      %c12_124 = arith.constant 12 : index
      %339 = memref.load %arg3[%c1_123, %c12_124] : memref<2x49xf32, #tpu.memory_space<smem>>
      %340 = vector.broadcast %339 : f32 to vector<16x16xf32>
      %341 = arith.mulf %340, %281 : vector<16x16xf32>
      %342 = arith.addf %338, %341 : vector<16x16xf32>
      %c1_125 = arith.constant 1 : index
      %c13_126 = arith.constant 13 : index
      %343 = memref.load %arg3[%c1_125, %c13_126] : memref<2x49xf32, #tpu.memory_space<smem>>
      %344 = vector.broadcast %343 : f32 to vector<16x16xf32>
      %345 = arith.mulf %344, %284 : vector<16x16xf32>
      %346 = arith.addf %342, %345 : vector<16x16xf32>
      %cst_127 = arith.constant 0.000000e+00 : f32
      %347 = vector.broadcast %cst_127 : f32 to vector<2x16xf32>
      %348 = vector.extract_strided_slice %346 {offsets = [0, 0], sizes = [14, 16], strides = [1, 1]} : vector<16x16xf32> to vector<14x16xf32>
      %349 = tpu.concatenate %347, %348 in 0 : vector<2x16xf32>, vector<14x16xf32> -> vector<16x16xf32>
      %350 = arith.addf %317, %349 : vector<16x16xf32>
      %cst_128 = arith.constant 0.000000e+00 : f32
      %351 = vector.broadcast %cst_128 : f32 to vector<16x16xf32>
      %c1_129 = arith.constant 1 : index
      %c14_130 = arith.constant 14 : index
      %352 = memref.load %arg3[%c1_129, %c14_130] : memref<2x49xf32, #tpu.memory_space<smem>>
      %353 = vector.broadcast %352 : f32 to vector<16x16xf32>
      %354 = arith.mulf %353, %269 : vector<16x16xf32>
      %355 = arith.addf %351, %354 : vector<16x16xf32>
      %c1_131 = arith.constant 1 : index
      %c15_132 = arith.constant 15 : index
      %356 = memref.load %arg3[%c1_131, %c15_132] : memref<2x49xf32, #tpu.memory_space<smem>>
      %357 = vector.broadcast %356 : f32 to vector<16x16xf32>
      %358 = arith.mulf %357, %272 : vector<16x16xf32>
      %359 = arith.addf %355, %358 : vector<16x16xf32>
      %c1_133 = arith.constant 1 : index
      %c16_134 = arith.constant 16 : index
      %360 = memref.load %arg3[%c1_133, %c16_134] : memref<2x49xf32, #tpu.memory_space<smem>>
      %361 = vector.broadcast %360 : f32 to vector<16x16xf32>
      %362 = arith.mulf %361, %275 : vector<16x16xf32>
      %363 = arith.addf %359, %362 : vector<16x16xf32>
      %c1_135 = arith.constant 1 : index
      %c17_136 = arith.constant 17 : index
      %364 = memref.load %arg3[%c1_135, %c17_136] : memref<2x49xf32, #tpu.memory_space<smem>>
      %365 = vector.broadcast %364 : f32 to vector<16x16xf32>
      %366 = arith.mulf %365, %19 : vector<16x16xf32>
      %367 = arith.addf %363, %366 : vector<16x16xf32>
      %c1_137 = arith.constant 1 : index
      %c18_138 = arith.constant 18 : index
      %368 = memref.load %arg3[%c1_137, %c18_138] : memref<2x49xf32, #tpu.memory_space<smem>>
      %369 = vector.broadcast %368 : f32 to vector<16x16xf32>
      %370 = arith.mulf %369, %278 : vector<16x16xf32>
      %371 = arith.addf %367, %370 : vector<16x16xf32>
      %c1_139 = arith.constant 1 : index
      %c19_140 = arith.constant 19 : index
      %372 = memref.load %arg3[%c1_139, %c19_140] : memref<2x49xf32, #tpu.memory_space<smem>>
      %373 = vector.broadcast %372 : f32 to vector<16x16xf32>
      %374 = arith.mulf %373, %281 : vector<16x16xf32>
      %375 = arith.addf %371, %374 : vector<16x16xf32>
      %c1_141 = arith.constant 1 : index
      %c20_142 = arith.constant 20 : index
      %376 = memref.load %arg3[%c1_141, %c20_142] : memref<2x49xf32, #tpu.memory_space<smem>>
      %377 = vector.broadcast %376 : f32 to vector<16x16xf32>
      %378 = arith.mulf %377, %284 : vector<16x16xf32>
      %379 = arith.addf %375, %378 : vector<16x16xf32>
      %cst_143 = arith.constant 0.000000e+00 : f32
      %380 = vector.broadcast %cst_143 : f32 to vector<1x16xf32>
      %381 = vector.extract_strided_slice %379 {offsets = [0, 0], sizes = [15, 16], strides = [1, 1]} : vector<16x16xf32> to vector<15x16xf32>
      %382 = tpu.concatenate %380, %381 in 0 : vector<1x16xf32>, vector<15x16xf32> -> vector<16x16xf32>
      %383 = arith.addf %350, %382 : vector<16x16xf32>
      %cst_144 = arith.constant 0.000000e+00 : f32
      %384 = vector.broadcast %cst_144 : f32 to vector<16x16xf32>
      %c1_145 = arith.constant 1 : index
      %c21_146 = arith.constant 21 : index
      %385 = memref.load %arg3[%c1_145, %c21_146] : memref<2x49xf32, #tpu.memory_space<smem>>
      %386 = vector.broadcast %385 : f32 to vector<16x16xf32>
      %387 = arith.mulf %386, %269 : vector<16x16xf32>
      %388 = arith.addf %384, %387 : vector<16x16xf32>
      %c1_147 = arith.constant 1 : index
      %c22_148 = arith.constant 22 : index
      %389 = memref.load %arg3[%c1_147, %c22_148] : memref<2x49xf32, #tpu.memory_space<smem>>
      %390 = vector.broadcast %389 : f32 to vector<16x16xf32>
      %391 = arith.mulf %390, %272 : vector<16x16xf32>
      %392 = arith.addf %388, %391 : vector<16x16xf32>
      %c1_149 = arith.constant 1 : index
      %c23_150 = arith.constant 23 : index
      %393 = memref.load %arg3[%c1_149, %c23_150] : memref<2x49xf32, #tpu.memory_space<smem>>
      %394 = vector.broadcast %393 : f32 to vector<16x16xf32>
      %395 = arith.mulf %394, %275 : vector<16x16xf32>
      %396 = arith.addf %392, %395 : vector<16x16xf32>
      %c1_151 = arith.constant 1 : index
      %c24_152 = arith.constant 24 : index
      %397 = memref.load %arg3[%c1_151, %c24_152] : memref<2x49xf32, #tpu.memory_space<smem>>
      %398 = vector.broadcast %397 : f32 to vector<16x16xf32>
      %399 = arith.mulf %398, %19 : vector<16x16xf32>
      %400 = arith.addf %396, %399 : vector<16x16xf32>
      %c1_153 = arith.constant 1 : index
      %c25_154 = arith.constant 25 : index
      %401 = memref.load %arg3[%c1_153, %c25_154] : memref<2x49xf32, #tpu.memory_space<smem>>
      %402 = vector.broadcast %401 : f32 to vector<16x16xf32>
      %403 = arith.mulf %402, %278 : vector<16x16xf32>
      %404 = arith.addf %400, %403 : vector<16x16xf32>
      %c1_155 = arith.constant 1 : index
      %c26_156 = arith.constant 26 : index
      %405 = memref.load %arg3[%c1_155, %c26_156] : memref<2x49xf32, #tpu.memory_space<smem>>
      %406 = vector.broadcast %405 : f32 to vector<16x16xf32>
      %407 = arith.mulf %406, %281 : vector<16x16xf32>
      %408 = arith.addf %404, %407 : vector<16x16xf32>
      %c1_157 = arith.constant 1 : index
      %c27_158 = arith.constant 27 : index
      %409 = memref.load %arg3[%c1_157, %c27_158] : memref<2x49xf32, #tpu.memory_space<smem>>
      %410 = vector.broadcast %409 : f32 to vector<16x16xf32>
      %411 = arith.mulf %410, %284 : vector<16x16xf32>
      %412 = arith.addf %408, %411 : vector<16x16xf32>
      %413 = arith.addf %383, %412 : vector<16x16xf32>
      %cst_159 = arith.constant 0.000000e+00 : f32
      %414 = vector.broadcast %cst_159 : f32 to vector<16x16xf32>
      %c1_160 = arith.constant 1 : index
      %c28_161 = arith.constant 28 : index
      %415 = memref.load %arg3[%c1_160, %c28_161] : memref<2x49xf32, #tpu.memory_space<smem>>
      %416 = vector.broadcast %415 : f32 to vector<16x16xf32>
      %417 = arith.mulf %416, %269 : vector<16x16xf32>
      %418 = arith.addf %414, %417 : vector<16x16xf32>
      %c1_162 = arith.constant 1 : index
      %c29_163 = arith.constant 29 : index
      %419 = memref.load %arg3[%c1_162, %c29_163] : memref<2x49xf32, #tpu.memory_space<smem>>
      %420 = vector.broadcast %419 : f32 to vector<16x16xf32>
      %421 = arith.mulf %420, %272 : vector<16x16xf32>
      %422 = arith.addf %418, %421 : vector<16x16xf32>
      %c1_164 = arith.constant 1 : index
      %c30_165 = arith.constant 30 : index
      %423 = memref.load %arg3[%c1_164, %c30_165] : memref<2x49xf32, #tpu.memory_space<smem>>
      %424 = vector.broadcast %423 : f32 to vector<16x16xf32>
      %425 = arith.mulf %424, %275 : vector<16x16xf32>
      %426 = arith.addf %422, %425 : vector<16x16xf32>
      %c1_166 = arith.constant 1 : index
      %c31_167 = arith.constant 31 : index
      %427 = memref.load %arg3[%c1_166, %c31_167] : memref<2x49xf32, #tpu.memory_space<smem>>
      %428 = vector.broadcast %427 : f32 to vector<16x16xf32>
      %429 = arith.mulf %428, %19 : vector<16x16xf32>
      %430 = arith.addf %426, %429 : vector<16x16xf32>
      %c1_168 = arith.constant 1 : index
      %c32_169 = arith.constant 32 : index
      %431 = memref.load %arg3[%c1_168, %c32_169] : memref<2x49xf32, #tpu.memory_space<smem>>
      %432 = vector.broadcast %431 : f32 to vector<16x16xf32>
      %433 = arith.mulf %432, %278 : vector<16x16xf32>
      %434 = arith.addf %430, %433 : vector<16x16xf32>
      %c1_170 = arith.constant 1 : index
      %c33_171 = arith.constant 33 : index
      %435 = memref.load %arg3[%c1_170, %c33_171] : memref<2x49xf32, #tpu.memory_space<smem>>
      %436 = vector.broadcast %435 : f32 to vector<16x16xf32>
      %437 = arith.mulf %436, %281 : vector<16x16xf32>
      %438 = arith.addf %434, %437 : vector<16x16xf32>
      %c1_172 = arith.constant 1 : index
      %c34_173 = arith.constant 34 : index
      %439 = memref.load %arg3[%c1_172, %c34_173] : memref<2x49xf32, #tpu.memory_space<smem>>
      %440 = vector.broadcast %439 : f32 to vector<16x16xf32>
      %441 = arith.mulf %440, %284 : vector<16x16xf32>
      %442 = arith.addf %438, %441 : vector<16x16xf32>
      %cst_174 = arith.constant 0.000000e+00 : f32
      %443 = vector.broadcast %cst_174 : f32 to vector<1x16xf32>
      %444 = vector.extract_strided_slice %442 {offsets = [1, 0], sizes = [15, 16], strides = [1, 1]} : vector<16x16xf32> to vector<15x16xf32>
      %445 = tpu.concatenate %444, %443 in 0 : vector<15x16xf32>, vector<1x16xf32> -> vector<16x16xf32>
      %446 = arith.addf %413, %445 : vector<16x16xf32>
      %cst_175 = arith.constant 0.000000e+00 : f32
      %447 = vector.broadcast %cst_175 : f32 to vector<16x16xf32>
      %c1_176 = arith.constant 1 : index
      %c35_177 = arith.constant 35 : index
      %448 = memref.load %arg3[%c1_176, %c35_177] : memref<2x49xf32, #tpu.memory_space<smem>>
      %449 = vector.broadcast %448 : f32 to vector<16x16xf32>
      %450 = arith.mulf %449, %269 : vector<16x16xf32>
      %451 = arith.addf %447, %450 : vector<16x16xf32>
      %c1_178 = arith.constant 1 : index
      %c36_179 = arith.constant 36 : index
      %452 = memref.load %arg3[%c1_178, %c36_179] : memref<2x49xf32, #tpu.memory_space<smem>>
      %453 = vector.broadcast %452 : f32 to vector<16x16xf32>
      %454 = arith.mulf %453, %272 : vector<16x16xf32>
      %455 = arith.addf %451, %454 : vector<16x16xf32>
      %c1_180 = arith.constant 1 : index
      %c37_181 = arith.constant 37 : index
      %456 = memref.load %arg3[%c1_180, %c37_181] : memref<2x49xf32, #tpu.memory_space<smem>>
      %457 = vector.broadcast %456 : f32 to vector<16x16xf32>
      %458 = arith.mulf %457, %275 : vector<16x16xf32>
      %459 = arith.addf %455, %458 : vector<16x16xf32>
      %c1_182 = arith.constant 1 : index
      %c38_183 = arith.constant 38 : index
      %460 = memref.load %arg3[%c1_182, %c38_183] : memref<2x49xf32, #tpu.memory_space<smem>>
      %461 = vector.broadcast %460 : f32 to vector<16x16xf32>
      %462 = arith.mulf %461, %19 : vector<16x16xf32>
      %463 = arith.addf %459, %462 : vector<16x16xf32>
      %c1_184 = arith.constant 1 : index
      %c39_185 = arith.constant 39 : index
      %464 = memref.load %arg3[%c1_184, %c39_185] : memref<2x49xf32, #tpu.memory_space<smem>>
      %465 = vector.broadcast %464 : f32 to vector<16x16xf32>
      %466 = arith.mulf %465, %278 : vector<16x16xf32>
      %467 = arith.addf %463, %466 : vector<16x16xf32>
      %c1_186 = arith.constant 1 : index
      %c40_187 = arith.constant 40 : index
      %468 = memref.load %arg3[%c1_186, %c40_187] : memref<2x49xf32, #tpu.memory_space<smem>>
      %469 = vector.broadcast %468 : f32 to vector<16x16xf32>
      %470 = arith.mulf %469, %281 : vector<16x16xf32>
      %471 = arith.addf %467, %470 : vector<16x16xf32>
      %c1_188 = arith.constant 1 : index
      %c41_189 = arith.constant 41 : index
      %472 = memref.load %arg3[%c1_188, %c41_189] : memref<2x49xf32, #tpu.memory_space<smem>>
      %473 = vector.broadcast %472 : f32 to vector<16x16xf32>
      %474 = arith.mulf %473, %284 : vector<16x16xf32>
      %475 = arith.addf %471, %474 : vector<16x16xf32>
      %cst_190 = arith.constant 0.000000e+00 : f32
      %476 = vector.broadcast %cst_190 : f32 to vector<2x16xf32>
      %477 = vector.extract_strided_slice %475 {offsets = [2, 0], sizes = [14, 16], strides = [1, 1]} : vector<16x16xf32> to vector<14x16xf32>
      %478 = tpu.concatenate %477, %476 in 0 : vector<14x16xf32>, vector<2x16xf32> -> vector<16x16xf32>
      %479 = arith.addf %446, %478 : vector<16x16xf32>
      %cst_191 = arith.constant 0.000000e+00 : f32
      %480 = vector.broadcast %cst_191 : f32 to vector<16x16xf32>
      %c1_192 = arith.constant 1 : index
      %c42_193 = arith.constant 42 : index
      %481 = memref.load %arg3[%c1_192, %c42_193] : memref<2x49xf32, #tpu.memory_space<smem>>
      %482 = vector.broadcast %481 : f32 to vector<16x16xf32>
      %483 = arith.mulf %482, %269 : vector<16x16xf32>
      %484 = arith.addf %480, %483 : vector<16x16xf32>
      %c1_194 = arith.constant 1 : index
      %c43_195 = arith.constant 43 : index
      %485 = memref.load %arg3[%c1_194, %c43_195] : memref<2x49xf32, #tpu.memory_space<smem>>
      %486 = vector.broadcast %485 : f32 to vector<16x16xf32>
      %487 = arith.mulf %486, %272 : vector<16x16xf32>
      %488 = arith.addf %484, %487 : vector<16x16xf32>
      %c1_196 = arith.constant 1 : index
      %c44_197 = arith.constant 44 : index
      %489 = memref.load %arg3[%c1_196, %c44_197] : memref<2x49xf32, #tpu.memory_space<smem>>
      %490 = vector.broadcast %489 : f32 to vector<16x16xf32>
      %491 = arith.mulf %490, %275 : vector<16x16xf32>
      %492 = arith.addf %488, %491 : vector<16x16xf32>
      %c1_198 = arith.constant 1 : index
      %c45_199 = arith.constant 45 : index
      %493 = memref.load %arg3[%c1_198, %c45_199] : memref<2x49xf32, #tpu.memory_space<smem>>
      %494 = vector.broadcast %493 : f32 to vector<16x16xf32>
      %495 = arith.mulf %494, %19 : vector<16x16xf32>
      %496 = arith.addf %492, %495 : vector<16x16xf32>
      %c1_200 = arith.constant 1 : index
      %c46_201 = arith.constant 46 : index
      %497 = memref.load %arg3[%c1_200, %c46_201] : memref<2x49xf32, #tpu.memory_space<smem>>
      %498 = vector.broadcast %497 : f32 to vector<16x16xf32>
      %499 = arith.mulf %498, %278 : vector<16x16xf32>
      %500 = arith.addf %496, %499 : vector<16x16xf32>
      %c1_202 = arith.constant 1 : index
      %c47_203 = arith.constant 47 : index
      %501 = memref.load %arg3[%c1_202, %c47_203] : memref<2x49xf32, #tpu.memory_space<smem>>
      %502 = vector.broadcast %501 : f32 to vector<16x16xf32>
      %503 = arith.mulf %502, %281 : vector<16x16xf32>
      %504 = arith.addf %500, %503 : vector<16x16xf32>
      %c1_204 = arith.constant 1 : index
      %c48_205 = arith.constant 48 : index
      %505 = memref.load %arg3[%c1_204, %c48_205] : memref<2x49xf32, #tpu.memory_space<smem>>
      %506 = vector.broadcast %505 : f32 to vector<16x16xf32>
      %507 = arith.mulf %506, %284 : vector<16x16xf32>
      %508 = arith.addf %504, %507 : vector<16x16xf32>
      %cst_206 = arith.constant 0.000000e+00 : f32
      %509 = vector.broadcast %cst_206 : f32 to vector<3x16xf32>
      %510 = vector.extract_strided_slice %508 {offsets = [3, 0], sizes = [13, 16], strides = [1, 1]} : vector<16x16xf32> to vector<13x16xf32>
      %511 = tpu.concatenate %510, %509 in 0 : vector<13x16xf32>, vector<3x16xf32> -> vector<16x16xf32>
      %512 = arith.addf %479, %511 : vector<16x16xf32>
      %513 = arith.negf %512 : vector<16x16xf32>
      %514 = math.exp %513 : vector<16x16xf32>
      %cst_207 = arith.constant 1.000000e+00 : f32
      %515 = vector.broadcast %cst_207 : f32 to vector<16x16xf32>
      %516 = arith.addf %515, %514 : vector<16x16xf32>
      %517 = arith.divf %515, %516 : vector<16x16xf32>
      %c0_208 = arith.constant 0 : index
      %c0_209 = arith.constant 0 : index
      %c0_210 = arith.constant 0 : index
      %518 = vector.load %arg4[%c0_208, %c0_209, %c0_210] : memref<1x16x16xf32, #tpu.memory_space<vmem>>, vector<1x16x16xf32>
      %519 = vector.shape_cast %518 : vector<1x16x16xf32> to vector<16x16xf32>
      %520 = vector.shape_cast %517 : vector<16x16xf32> to vector<1x16x16xf32>
      tpu.vector_store %arg4[%c0_208, %c0_209, %c0_210], %520 {strides = array<i32>} : memref<1x16x16xf32, #tpu.memory_space<vmem>>, vector<1x16x16xf32>,
    } else {
    }
    return
  }
  func.func @transform_0(%arg0: i32, %arg1: i32) -> (i32, i32, i32, i32) {
    %c0_i32 = arith.constant 0 : i32
    %c0_i32_0 = arith.constant 0 : i32
    %c0_i32_1 = arith.constant 0 : i32
    return %arg0, %arg1, %c0_i32, %c0_i32_0 : i32, i32, i32, i32
  }
  func.func @transform_1(%arg0: i32, %arg1: i32) -> (i32, i32) {
    %c0_i32 = arith.constant 0 : i32
    %c0_i32_0 = arith.constant 0 : i32
    %c0_i32_1 = arith.constant 0 : i32
    return %c0_i32, %c0_i32_0 : i32, i32
  }
  func.func @transform_2(%arg0: i32, %arg1: i32) -> (i32, i32, i32) {
    %c0_i32 = arith.constant 0 : i32
    %c0_i32_0 = arith.constant 0 : i32
    %c0_i32_1 = arith.constant 0 : i32
    return %arg0, %c0_i32, %c0_i32_0 : i32, i32, i32
  }
}

module attributes {stable_mosaic.version = 11 : i64} {
  func.func @_apply_kernel(%arg0: i32, %arg1: i32, %arg2: memref<1x1x256xf32, #tpu.memory_space<vmem>>, %arg3: memref<1x4x256xf32, #tpu.memory_space<vmem>>, %arg4: memref<1x4x256xf32, #tpu.memory_space<vmem>>) attributes {dimension_semantics = [#tpu.dimension_semantics<parallel>, #tpu.dimension_semantics<parallel>], iteration_bounds = array<i64: 2, 1>, scalar_prefetch = 0 : i64, scratch_operands = 0 : i64, tpu.core_type = #tpu.core_type<tc>, window_params = [{transform_indices = @transform_0, window_bounds = array<i64: 1, 1, 256>}, {transform_indices = @transform_1, window_bounds = array<i64: 1, 4, 256>}, {transform_indices = @transform_2, window_bounds = array<i64: 1, 4, 256>}]} {
    %c0 = arith.constant 0 : index
    %c0_0 = arith.constant 0 : index
    %c0_1 = arith.constant 0 : index
    %0 = vector.load %arg2[%c0, %c0_0, %c0_1] : memref<1x1x256xf32, #tpu.memory_space<vmem>>, vector<1x1x256xf32>
    %1 = vector.shape_cast %0 : vector<1x1x256xf32> to vector<1x256xf32>
    %c0_2 = arith.constant 0 : index
    %c0_3 = arith.constant 0 : index
    %c0_4 = arith.constant 0 : index
    %2 = vector.load %arg3[%c0_2, %c0_3, %c0_4] : memref<1x4x256xf32, #tpu.memory_space<vmem>>, vector<1x4x256xf32>
    %3 = vector.shape_cast %2 : vector<1x4x256xf32> to vector<4x256xf32>
    %4 = vector.broadcast %1 : vector<1x256xf32> to vector<4x256xf32>
    %5 = arith.mulf %3, %4 : vector<4x256xf32>
    %c0_5 = arith.constant 0 : index
    %c0_6 = arith.constant 0 : index
    %c0_7 = arith.constant 0 : index
    %6 = vector.load %arg4[%c0_5, %c0_6, %c0_7] : memref<1x4x256xf32, #tpu.memory_space<vmem>>, vector<1x4x256xf32>
    %7 = vector.shape_cast %6 : vector<1x4x256xf32> to vector<4x256xf32>
    %8 = vector.shape_cast %5 : vector<4x256xf32> to vector<1x4x256xf32>
    tpu.vector_store %arg4[%c0_5, %c0_6, %c0_7], %8 {strides = array<i32>} : memref<1x4x256xf32, #tpu.memory_space<vmem>>, vector<1x4x256xf32>,
    return
  }
  func.func @transform_0(%arg0: i32, %arg1: i32) -> (i32, i32, i32) {
    %c0_i32 = arith.constant 0 : i32
    %c0_i32_0 = arith.constant 0 : i32
    %c0_i32_1 = arith.constant 0 : i32
    return %arg0, %c0_i32, %c0_i32_0 : i32, i32, i32
  }
  func.func @transform_1(%arg0: i32, %arg1: i32) -> (i32, i32, i32) {
    %c0_i32 = arith.constant 0 : i32
    %c0_i32_0 = arith.constant 0 : i32
    return %arg0, %arg1, %c0_i32 : i32, i32, i32
  }
  func.func @transform_2(%arg0: i32, %arg1: i32) -> (i32, i32, i32) {
    %c0_i32 = arith.constant 0 : i32
    %c0_i32_0 = arith.constant 0 : i32
    return %arg0, %arg1, %c0_i32 : i32, i32, i32
  }
}

</mosaic_0001>

<llo_original>
// kernel: spatial_attention.3
$region0: #{spatial_attention.3}
  #allocation0 [shape = 'u32[]', space=smem, size = 0x4, offset = 0x4, fixed_abs, tag = 'smem constant byte address 0x4 - core index']
  #allocation1 [shape = 'u32[144,128]{1,0:T(1,128)}', space=vmem, size = 0x12000, scoped, tag = 'internal scratch']
  %s0 = inlined_call_operand.vmem [shape: f32[2,1,256], index: 0, kind: input, shape index: {}]
  %s1 = inlined_call_operand.vmem [shape: f32[2,4,256], index: 1, kind: input, shape index: {}]
  %s2 = inlined_call_operand.vmem [shape: f32[2,4,256], index: 2, kind: output, shape index: {}]
  %s3 = sld [smem:[#allocation0]]
  $region41: #{spatial_attention.3} parent=0
    _
  %s5 = ssub.s32 1, %s3
  %s6 = scalar_select 0, %s5, %s3
  loop: start=0, step=1, limit=4
  $region2: #{spatial_attention.3} parent=0 // loop_pre_header
    _
  $region3: #{spatial_attention.3} parent=0 // loop_header
    %s8 = sphi 0, %s12
    %p9 = scmp.ge.s32.totalorder %s8, 4
    %s15 = sphi 0, %s27
    %s16 = sphi 0, %s23
    %s17 = sphi 0, %s15
    %s18 = sphi 0, %s16
    %s19 = sphi 0, %s17
    %s20 = sphi 0, %s18
    %s30 = sphi 0, %s32
    %s33 = sphi 0, %s30
    %s34 = sphi 0, %s33
    %s50 = sphi 0, %s34
    %s58 = sphi 0, %s60
    %s61 = sphi 0, %s58
    %s62 = sphi 0, %s61
    %s78 = sphi 0, %s62
    %s86 = sphi 0, %s88
    %s89 = sphi 0, %s86
    %s90 = sphi 0, %s89
    %s106 = sphi 0, %s90
  $region4: #{spatial_attention.3} parent=0 // loop_header_branch
    %11 = sbr.rel (%p9) target = $region8
  $region5: #{spatial_attention.3} parent=0 // loop_body
    %s13 = ssub.s32 %s8, 1
    %s14 = ssub.s32 %s8, 2
    %s21 = sadd.s32 1, %s16
    %p22 = scmp.ge.s32.totalorder %s21, 1
    %s23 = scalar_select %p22, 0, %s21
    %s24 = sadd.s32 1, %s15
    %s25 = scalar_select %p22, %s24, %s15
    %p26 = scmp.ge.s32.totalorder %s25, 2
    %s27 = scalar_select %p26, 0, %s25
    %s28 = ssub.s32 %s15, %s27
    %p29 = scmp.eq.s32.totalorder %s28, 0
    %s31 = sadd.s32 %s30, 1
    %s32 = scalar_select %p29, %s30, %s31
    %p35 = pneg %p29
    %p36 = scmp.eq.s32.totalorder %s8, 1
    %p37 = por %p35, %p36
    %p38 = scmp.ne.s32.totalorder %s30, %s33
    %p39 = scmp.eq.s32.totalorder %s8, 0
    %p40 = por %p38, %p39
    %p41 = scmp.ne.s32.totalorder %s30, %s33
    %p42 = scmp.eq.s32.totalorder %s13, 1
    %p43 = por %p41, %p42
    %p44 = scmp.ne.s32.totalorder %s33, %s34
    %p45 = scmp.eq.s32.totalorder %s13, 0
    %p46 = por %p44, %p45
    %p47 = scmp.ne.s32.totalorder %s33, %s34
    %p48 = scmp.eq.s32.totalorder %s14, 1
    %p49 = por %p47, %p48
    %p51 = scmp.ne.s32.totalorder %s34, %s50
    %p52 = scmp.eq.s32.totalorder %s14, 0
    %p53 = por %p51, %p52
    %s54 = ssub.s32 %s15, %s27
    %s55 = ssub.s32 %s16, %s23
    %s56 = sor.u32 %s54, %s55
    %p57 = scmp.eq.s32.totalorder %s56, 0
    %s59 = sadd.s32 %s58, 1
    %s60 = scalar_select %p57, %s58, %s59
    %p63 = pneg %p57
    %p64 = scmp.eq.s32.totalorder %s8, 1
    %p65 = por %p63, %p64
    %p66 = scmp.ne.s32.totalorder %s58, %s61
    %p67 = scmp.eq.s32.totalorder %s8, 0
    %p68 = por %p66, %p67
    %p69 = scmp.ne.s32.totalorder %s58, %s61
    %p70 = scmp.eq.s32.totalorder %s13, 1
    %p71 = por %p69, %p70
    %p72 = scmp.ne.s32.totalorder %s61, %s62
    %p73 = scmp.eq.s32.totalorder %s13, 0
    %p74 = por %p72, %p73
    %p75 = scmp.ne.s32.totalorder %s61, %s62
    %p76 = scmp.eq.s32.totalorder %s14, 1
    %p77 = por %p75, %p76
    %p79 = scmp.ne.s32.totalorder %s62, %s78
    %p80 = scmp.eq.s32.totalorder %s14, 0
    %p81 = por %p79, %p80
    %s82 = ssub.s32 %s15, %s27
    %s83 = ssub.s32 %s16, %s23
    %s84 = sor.u32 %s82, %s83
    %p85 = scmp.eq.s32.totalorder %s84, 0
    %s87 = sadd.s32 %s86, 1
    %s88 = scalar_select %p85, %s86, %s87
    %p91 = pneg %p85
    %p92 = scmp.eq.s32.totalorder %s8, 1
    %p93 = por %p91, %p92
    %p94 = scmp.ne.s32.totalorder %s86, %s89
    %p95 = scmp.eq.s32.totalorder %s8, 0
    %p96 = por %p94, %p95
    %p97 = scmp.ne.s32.totalorder %s86, %s89
    %p98 = scmp.eq.s32.totalorder %s13, 1
    %p99 = por %p97, %p98
    %p100 = scmp.ne.s32.totalorder %s89, %s90
    %p101 = scmp.eq.s32.totalorder %s13, 0
    %p102 = por %p100, %p101
    %p103 = scmp.ne.s32.totalorder %s89, %s90
    %p104 = scmp.eq.s32.totalorder %s14, 1
    %p105 = por %p103, %p104
    %p107 = scmp.ne.s32.totalorder %s90, %s106
    %p108 = scmp.eq.s32.totalorder %s14, 0
    %p109 = por %p107, %p108
    %p110 = scmp.le.s32.totalorder 1, %s8
    %p111 = scmp.lt.s32.totalorder %s8, 3
    %p112 = pnand %p110, %p111
    %p113 = pneg %p112
    // Predicated region
    $region9: #{spatial_attention.3} parent=5 // pred_check
      _
    $region10: #{spatial_attention.3} parent=5 // pred_check_branch
      %115 = sbr.rel (%p112) target = $region12
    $region11: #{spatial_attention.3} parent=5 // pred_region
      %s116 = ssub.s32 %s8, 1
    $region12: #{spatial_attention.3} parent=5 // pred_fallthru
      _
    %p117 = scmp.lt.s32.totalorder %s8, 2
    // Predicated region
    $region13: #{spatial_attention.3} parent=5 // pred_check
      %p118 = pneg %p117
    $region14: #{spatial_attention.3} parent=5 // pred_check_branch
      %120 = sbr.rel (%p118) target = $region16
    $region15: #{spatial_attention.3} parent=5 // pred_region
      // Predicated region
      $region17: #{spatial_attention.3} parent=15 // pred_check
        %p121 = pneg %p40
      $region18: #{spatial_attention.3} parent=15 // pred_check_branch
        %123 = sbr.rel (%p121) target = $region20
      $region19: #{spatial_attention.3} parent=15 // pred_region
        %p124 = scmp.lt.s32.totalorder %s15, 1
        %s125 = scalar_select %p124, %s15, 1
        %s126 = smul.addr %s125, 2
        %s127 = scalar_lea.vmem %s0, %s126
      $region20: #{spatial_attention.3} parent=15 // pred_fallthru
        _
      // Predicated region
      $region21: #{spatial_attention.3} parent=15 // pred_check
        %p128 = pneg %p68
      $region22: #{spatial_attention.3} parent=15 // pred_check_branch
        %130 = sbr.rel (%p128) target = $region24
      $region23: #{spatial_attention.3} parent=15 // pred_region
        %p131 = scmp.lt.s32.totalorder %s15, 1
        %s132 = scalar_select %p131, %s15, 1
        %p133 = scmp.lt.s32.totalorder %s16, 0
        %s134 = scalar_select %p133, %s16, 0
        %s135 = smul.addr %s134, 2
        %s136 = smul.addr %s132, 2
        %s137 = sadd.s32 %s135, %s136
        %s138 = smul.addr %s137, 4
        %s139 = scalar_lea.vmem %s1, %s138
      $region24: #{spatial_attention.3} parent=15 // pred_fallthru
        _
    $region16: #{spatial_attention.3} parent=5 // pred_fallthru
      _
    %p140 = scmp.le.s32.totalorder 1, %s8
    %p141 = scmp.lt.s32.totalorder %s8, 3
    %p142 = pnand %p140, %p141
    %p143 = pneg %p142
    // Predicated region
    $region25: #{spatial_attention.3} parent=5 // pred_check
      _
    $region26: #{spatial_attention.3} parent=5 // pred_check_branch
      %145 = sbr.rel (%p142) target = $region28
    $region27: #{spatial_attention.3} parent=5 // pred_region
      %s146 = ssub.s32 %s8, 1
      %p147 = scmp.lt.s32.totalorder %s17, 1
      %s148 = scalar_select %p147, %s17, 1
      %s149 = smul.addr %s148, 2
      %s150 = scalar_lea.vmem %s0, %s149
      %p151 = pneg %p46
      %p152 = pneg %p43
      %p153 = scmp.lt.s32.totalorder %s17, 1
      %s154 = scalar_select %p153, %s17, 1
      %p155 = scmp.lt.s32.totalorder %s18, 0
      %s156 = scalar_select %p155, %s18, 0
      %s157 = smul.addr %s156, 2
      %s158 = smul.addr %s154, 2
      %s159 = sadd.s32 %s157, %s158
      %s160 = smul.addr %s159, 4
      %s161 = scalar_lea.vmem %s1, %s160
      %p162 = pneg %p74
      %p163 = pneg %p71
      %p164 = pneg %p102
      %p165 = pneg %p99
      %p166 = scmp.lt.s32.totalorder %s17, 1
      %s167 = scalar_select %p166, %s17, 1
      %p168 = scmp.lt.s32.totalorder %s18, 0
      %s169 = scalar_select %p168, %s18, 0
      %s170 = smul.addr %s169, 2
      %s171 = smul.addr %s167, 2
      %s172 = sadd.s32 %s170, %s171
      %s173 = smul.addr %s172, 4
      %s174 = scalar_lea.vmem %s2, %s173
      %p175 = scmp.lt.s32.totalorder %s17, 1
      %s176 = scalar_select %p175, %s17, 1
      %s177 = smul.addr %s176, 2
      %s178 = scalar_lea.vmem %s0, %s177
      %p179 = scmp.lt.s32.totalorder %s17, 1
      %s180 = scalar_select %p179, %s17, 1
      %p181 = scmp.lt.s32.totalorder %s18, 0
      %s182 = scalar_select %p181, %s18, 0
      %s183 = smul.addr %s182, 2
      %s184 = smul.addr %s180, 2
      %s185 = sadd.s32 %s183, %s184
      %s186 = smul.addr %s185, 4
      %s187 = scalar_lea.vmem %s1, %s186
      %p188 = scmp.lt.s32.totalorder %s17, 1
      %s189 = scalar_select %p188, %s17, 1
      %p190 = scmp.lt.s32.totalorder %s18, 0
      %s191 = scalar_select %p190, %s18, 0
      %s192 = smul.addr %s191, 2
      %s193 = smul.addr %s189, 2
      %s194 = sadd.s32 %s192, %s193
      %s195 = smul.addr %s194, 4
      %s196 = scalar_lea.vmem %s2, %s195
      %v197 = vld [vmem:[%s178] sm:$0x3]
      %v198 = vld [vmem:[%s187] sm:$0xff]
      %v200 = vlaneseq
      %v201 = vshrl.u32 %v200, 7
      %v202 = vsub.s32 0, %v201
      %v203 = vrot.slane %v197, %v202
      %v204 = vlaneseq
      %v205 = vshrl.u32 %v204, 7
      %v206 = vsub.s32 1, %v205
      %v207 = vrot.slane %v197, %v206
      %v208 = vcombine.low %v203, %v207
      %v210 = vmul.f32 %v198, %v208
      %211 = vst [vmem:[%s196] sm:$0xff] %v210
      %p212 = scmp.lt.s32.totalorder %s17, 1
      %s213 = scalar_select %p212, %s17, 1
      %p214 = scmp.lt.s32.totalorder %s18, 0
      %s215 = scalar_select %p214, %s18, 0
      %s216 = smul.addr %s215, 2
      %s217 = smul.addr %s213, 2
      %s218 = sadd.s32 %s216, %s217
      %s219 = smul.addr %s218, 4
      %s220 = scalar_lea.vmem %s2, %s219
      // Predicated region
      $region29: #{spatial_attention.3} parent=27 // pred_check
        %p221 = pneg %p99
      $region30: #{spatial_attention.3} parent=27 // pred_check_branch
        %223 = sbr.rel (%p221) target = $region32
      $region31: #{spatial_attention.3} parent=27 // pred_region
        _
      $region32: #{spatial_attention.3} parent=27 // pred_fallthru
        _
    $region28: #{spatial_attention.3} parent=5 // pred_fallthru
      _
    %p224 = scmp.le.s32.totalorder 2, %s8
    // Predicated region
    $region33: #{spatial_attention.3} parent=5 // pred_check
      %p225 = pneg %p224
    $region34: #{spatial_attention.3} parent=5 // pred_check_branch
      %227 = sbr.rel (%p225) target = $region36
    $region35: #{spatial_attention.3} parent=5 // pred_region
      %s228 = ssub.s32 %s8, 2
      // Predicated region
      $region37: #{spatial_attention.3} parent=35 // pred_check
        %p229 = pneg %p105
      $region38: #{spatial_attention.3} parent=35 // pred_check_branch
        %231 = sbr.rel (%p229) target = $region40
      $region39: #{spatial_attention.3} parent=35 // pred_region
        %p232 = scmp.lt.s32.totalorder %s19, 1
        %s233 = scalar_select %p232, %s19, 1
        %p234 = scmp.lt.s32.totalorder %s20, 0
        %s235 = scalar_select %p234, %s20, 0
        %s236 = smul.addr %s235, 2
        %s237 = smul.addr %s233, 2
        %s238 = sadd.s32 %s236, %s237
        %s239 = smul.addr %s238, 4
        %s240 = scalar_lea.vmem %s2, %s239
      $region40: #{spatial_attention.3} parent=35 // pred_fallthru
        _
    $region36: #{spatial_attention.3} parent=5 // pred_fallthru
      _
  $region6: #{spatial_attention.3} parent=0 // loop_footer
    %s12 = sadd.s32 1, %s8
  $region7: #{spatial_attention.3} parent=0 // loop_footer_branch
    %7 = sbr.rel target = $region3
  $region8: #{spatial_attention.3} parent=0 // loop_exit
    _

// kernel: spatial_attention.2
$region0: #{spatial_attention.2}
  #allocation0 [shape = 'u32[]', space=smem, size = 0x4, offset = 0x4, fixed_abs, tag = 'smem constant byte address 0x4 - core index']
  #allocation1 [shape = 'u32[144,128]{1,0:T(1,128)}', space=vmem, size = 0x12000, scoped, tag = 'internal scratch']
  #allocation2 [shape = 'f32[16,16]{1,0:T(8,128)}', space=vmem, size = 0x2000, scoped, tag = 'scratch operand']
  #allocation3 [shape = 'f32[16,16]{1,0:T(8,128)}', space=vmem, size = 0x2000, scoped, tag = 'scratch operand']
  %s0 = inlined_call_operand.vmem [shape: f32[2,4,16,16], index: 0, kind: input, shape index: {}]
  %s1 = inlined_call_operand.vmem [shape: f32[2,49], index: 1, kind: input, shape index: {}]
  %s2 = inlined_call_operand.vmem [shape: f32[2,16,16], index: 2, kind: output, shape index: {}]
  %s3 = sld [smem:[#allocation0]]
  $region53: #{spatial_attention.2} parent=0
    _
  %s5 = ssub.s32 1, %s3
  %s6 = scalar_select 0, %s5, %s3
  $region1: #{spatial_attention.2} parent=0
    #allocation4 [shape = 'u8[1024]{0}', space=smem, size = 0x400, scoped, tag = 'input window, operand 1, single buffered']
    #allocation5 [shape = 's32[2]{0}', space=sflag, size = 0x8, scoped, tag = 'scoped memory for spatial_attention.2']
    %7 = vsyncpa [#allocation5], 0
    loop: start=0, step=1, limit=4
    $region2: #{spatial_attention.2} parent=1 // loop_pre_header
      _
    $region3: #{spatial_attention.2} parent=1 // loop_header
      %s9 = sphi 0, %s13
      %p10 = scmp.ge.s32.totalorder %s9, 4
      %s16 = sphi 0, %s28
      %s17 = sphi 0, %s24
      %s18 = sphi 0, %s16
      %s19 = sphi 0, %s17
      %s20 = sphi 0, %s18
      %s21 = sphi 0, %s19
      %s33 = sphi 0, %s35
      %s36 = sphi 0, %s33
      %s37 = sphi 0, %s36
      %s53 = sphi 0, %s37
      %s57 = sphi 0, %s57
      %s59 = sphi 0, %s57
      %s60 = sphi 0, %s59
      %s74 = sphi 0, %s60
      %s80 = sphi 0, %s82
      %s83 = sphi 0, %s80
      %s84 = sphi 0, %s83
      %s100 = sphi 0, %s84
    $region4: #{spatial_attention.2} parent=1 // loop_header_branch
      %12 = sbr.rel (%p10) target = $region8
    $region5: #{spatial_attention.2} parent=1 // loop_body
      %s14 = ssub.s32 %s9, 1
      %s15 = ssub.s32 %s9, 2
      %s22 = sadd.s32 1, %s17
      %p23 = scmp.ge.s32.totalorder %s22, 1
      %s24 = scalar_select %p23, 0, %s22
      %s25 = sadd.s32 1, %s16
      %s26 = scalar_select %p23, %s25, %s16
      %p27 = scmp.ge.s32.totalorder %s26, 2
      %s28 = scalar_select %p27, 0, %s26
      %s29 = ssub.s32 %s16, %s28
      %s30 = ssub.s32 %s17, %s24
      %s31 = sor.u32 %s29, %s30
      %p32 = scmp.eq.s32.totalorder %s31, 0
      %s34 = sadd.s32 %s33, 1
      %s35 = scalar_select %p32, %s33, %s34
      %p38 = pneg %p32
      %p39 = scmp.eq.s32.totalorder %s9, 1
      %p40 = por %p38, %p39
      %p41 = scmp.ne.s32.totalorder %s33, %s36
      %p42 = scmp.eq.s32.totalorder %s9, 0
      %p43 = por %p41, %p42
      %p44 = scmp.ne.s32.totalorder %s33, %s36
      %p45 = scmp.eq.s32.totalorder %s14, 1
      %p46 = por %p44, %p45
      %p47 = scmp.ne.s32.totalorder %s36, %s37
      %p48 = scmp.eq.s32.totalorder %s14, 0
      %p49 = por %p47, %p48
      %p50 = scmp.ne.s32.totalorder %s36, %s37
      %p51 = scmp.eq.s32.totalorder %s15, 1
      %p52 = por %p50, %p51
      %p54 = scmp.ne.s32.totalorder %s37, %s53
      %p55 = scmp.eq.s32.totalorder %s15, 0
      %p56 = por %p54, %p55
      %s58 = sadd.s32 %s57, 1
      %p61 = scmp.eq.s32.totalorder %s9, 1
      %p62 = scmp.ne.s32.totalorder %s57, %s59
      %p63 = scmp.eq.s32.totalorder %s9, 0
      %p64 = por %p62, %p63
      %p65 = scmp.ne.s32.totalorder %s57, %s59
      %p66 = scmp.eq.s32.totalorder %s14, 1
      %p67 = por %p65, %p66
      %p68 = scmp.ne.s32.totalorder %s59, %s60
      %p69 = scmp.eq.s32.totalorder %s14, 0
      %p70 = por %p68, %p69
      %p71 = scmp.ne.s32.totalorder %s59, %s60
      %p72 = scmp.eq.s32.totalorder %s15, 1
      %p73 = por %p71, %p72
      %p75 = scmp.ne.s32.totalorder %s60, %s74
      %p76 = scmp.eq.s32.totalorder %s15, 0
      %p77 = por %p75, %p76
      %s78 = ssub.s32 %s16, %s28
      %p79 = scmp.eq.s32.totalorder %s78, 0
      %s81 = sadd.s32 %s80, 1
      %s82 = scalar_select %p79, %s80, %s81
      %p85 = pneg %p79
      %p86 = scmp.eq.s32.totalorder %s9, 1
      %p87 = por %p85, %p86
      %p88 = scmp.ne.s32.totalorder %s80, %s83
      %p89 = scmp.eq.s32.totalorder %s9, 0
      %p90 = por %p88, %p89
      %p91 = scmp.ne.s32.totalorder %s80, %s83
      %p92 = scmp.eq.s32.totalorder %s14, 1
      %p93 = por %p91, %p92
      %p94 = scmp.ne.s32.totalorder %s83, %s84
      %p95 = scmp.eq.s32.totalorder %s14, 0
      %p96 = por %p94, %p95
      %p97 = scmp.ne.s32.totalorder %s83, %s84
      %p98 = scmp.eq.s32.totalorder %s15, 1
      %p99 = por %p97, %p98
      %p101 = scmp.ne.s32.totalorder %s84, %s100
      %p102 = scmp.eq.s32.totalorder %s15, 0
      %p103 = por %p101, %p102
      %p104 = scmp.le.s32.totalorder 1, %s9
      %p105 = scmp.lt.s32.totalorder %s9, 3
      %p106 = pnand %p104, %p105
      %p107 = pneg %p106
      // Predicated region
      $region9: #{spatial_attention.2} parent=5 // pred_check
        _
      $region10: #{spatial_attention.2} parent=5 // pred_check_branch
        %109 = sbr.rel (%p106) target = $region12
      $region11: #{spatial_attention.2} parent=5 // pred_region
        %s110 = ssub.s32 %s9, 1
        // Predicated region
        $region13: #{spatial_attention.2} parent=11 // pred_check
          %p111 = pneg %p70
        $region14: #{spatial_attention.2} parent=11 // pred_check_branch
          %113 = sbr.rel (%p111) target = $region16
        $region15: #{spatial_attention.2} parent=11 // pred_region
          %s115 = ssub.s32 32, 32
          %116 = vsyncadd [#allocation5], %s115
          %s118 = sshll.u32 %s1, 4
          %s119 = int_to_ptr.vmem [resolvable:$true] %s118
          %121 = dma.vmem_to_smem %s119, 32, [#allocation4], [#allocation5]
        $region16: #{spatial_attention.2} parent=11 // pred_fallthru
          _
      $region12: #{spatial_attention.2} parent=5 // pred_fallthru
        _
      %p122 = scmp.lt.s32.totalorder %s9, 2
      // Predicated region
      $region17: #{spatial_attention.2} parent=5 // pred_check
        %p123 = pneg %p122
      $region18: #{spatial_attention.2} parent=5 // pred_check_branch
        %125 = sbr.rel (%p123) target = $region20
      $region19: #{spatial_attention.2} parent=5 // pred_region
        // Predicated region
        $region21: #{spatial_attention.2} parent=19 // pred_check
          %p126 = pneg %p43
        $region22: #{spatial_attention.2} parent=19 // pred_check_branch
          %128 = sbr.rel (%p126) target = $region24
        $region23: #{spatial_attention.2} parent=19 // pred_region
          %s129 = smul.u32 4, %s17
          %p130 = scmp.lt.s32.totalorder %s16, 1
          %s131 = scalar_select %p130, %s16, 1
          %p132 = scmp.lt.s32.totalorder %s129, 3
          %s133 = scalar_select %p132, %s129, 3
          %s134 = smul.addr %s133, 2
          %s135 = smul.addr %s131, 8
          %s136 = sadd.s32 %s134, %s135
          %s137 = smul.addr %s136, 8
          %s138 = scalar_lea.vmem %s0, %s137
          %s139 = smul.u32 4, %s17
        $region24: #{spatial_attention.2} parent=19 // pred_fallthru
          _
      $region20: #{spatial_attention.2} parent=5 // pred_fallthru
        _
      %p140 = scmp.le.s32.totalorder 1, %s9
      %p141 = scmp.lt.s32.totalorder %s9, 3
      %p142 = pnand %p140, %p141
      %p143 = pneg %p142
      // Predicated region
      $region25: #{spatial_attention.2} parent=5 // pred_check
        _
      $region26: #{spatial_attention.2} parent=5 // pred_check_branch
        %145 = sbr.rel (%p142) target = $region28
      $region27: #{spatial_attention.2} parent=5 // pred_region
        %s146 = ssub.s32 %s9, 1
        // Predicated region
        $region29: #{spatial_attention.2} parent=27 // pred_check
          %p147 = pneg %p70
        $region30: #{spatial_attention.2} parent=27 // pred_check_branch
          %149 = sbr.rel (%p147) target = $region32
        $region31: #{spatial_attention.2} parent=27 // pred_region
          %150 = dma.done [#allocation5], 32
        $region32: #{spatial_attention.2} parent=27 // pred_fallthru
          _
        %151 = sfence
        %s152 = smul.u32 4, %s19
        %p153 = scmp.lt.s32.totalorder %s18, 1
        %s154 = scalar_select %p153, %s18, 1
        %p155 = scmp.lt.s32.totalorder %s152, 3
        %s156 = scalar_select %p155, %s152, 3
        %s157 = smul.addr %s156, 2
        %s158 = smul.addr %s154, 8
        %s159 = sadd.s32 %s157, %s158
        %s160 = smul.addr %s159, 8
        %s161 = scalar_lea.vmem %s0, %s160
        %p162 = pneg %p49
        %p163 = pneg %p46
        %p164 = pneg %p70
        %p165 = pneg %p67
        %p166 = pneg %p96
        %p167 = pneg %p93
        %p168 = scmp.lt.s32.totalorder %s18, 1
        %s169 = scalar_select %p168, %s18, 1
        %s170 = smul.addr %s169, 2
        %s171 = smul.addr %s170, 8
        %s172 = scalar_lea.vmem %s2, %s171
        %s173 = smul.u32 4, %s19
        %p174 = scmp.lt.s32.totalorder %s18, 1
        %s175 = scalar_select %p174, %s18, 1
        %p176 = scmp.lt.s32.totalorder %s173, 3
        %s177 = scalar_select %p176, %s173, 3
        %s178 = smul.addr %s177, 2
        %s179 = smul.addr %s175, 8
        %s180 = sadd.s32 %s178, %s179
        %s181 = smul.addr %s180, 8
        %s182 = scalar_lea.vmem %s0, %s181
        %s183 = smul.u32 4, %s19
        %p184 = scmp.lt.s32.totalorder %s18, 1
        %s185 = scalar_select %p184, %s18, 1
        %s186 = smul.addr %s185, 2
        %s187 = smul.addr %s186, 8
        %s188 = scalar_lea.vmem %s2, %s187
        %p189 = scmp.eq.s32.totalorder %s19, 0
        // Predicated region
        $region33: #{spatial_attention.2} parent=27 // pred_check
          %p190 = pneg %p189
        $region34: #{spatial_attention.2} parent=27 // pred_check_branch
          %192 = sbr.rel (%p190) target = $region36
        $region35: #{spatial_attention.2} parent=27 // pred_region
          %vm193 = vcmask 130048
          %194 = vst.msk [vmem:[#allocation2] sm:$0xff] %vm193, 0.0
          %195 = vst.msk [vmem:[#allocation2 + $0x8] sm:$0xff] %vm193, 0.0
          %196 = vst.msk [vmem:[#allocation3] sm:$0xff] %vm193, -inf
          %197 = vst.msk [vmem:[#allocation3 + $0x8] sm:$0xff] %vm193, -inf
        $region36: #{spatial_attention.2} parent=27 // pred_fallthru
          _
        %v198 = vld [vmem:[%s182] sm:$0xff]
        %v199 = vld [vmem:[%s182 + $0x8] sm:$0xff]
        %v200 = vld [vmem:[%s182 + $0x10] sm:$0xff]
        %v201 = vld [vmem:[%s182 + $0x18] sm:$0xff]
        %v202 = vld [vmem:[%s182 + $0x20] sm:$0xff]
        %v203 = vld [vmem:[%s182 + $0x28] sm:$0xff]
        %v204 = vld [vmem:[%s182 + $0x30] sm:$0xff]
        %v205 = vld [vmem:[%s182 + $0x38] sm:$0xff]
        %v206 = vld [vmem:[#allocation2] sm:$0xff]
        %v207 = vld [vmem:[#allocation2 + $0x8] sm:$0xff]
        %vm208 = vcmask 130048
        %v209 = vsel %vm208, %v198, 0.0
        %v210 = vsel %vm208, %v200, 0.0
        %v211 = vadd.f32 %v209, %v210
        %v212 = vsel %vm208, %v202, 0.0
        %v213 = vadd.f32 %v211, %v212
        %v214 = vsel %vm208, %v204, 0.0
        %v215 = vadd.f32 %v213, %v214
        %v216 = vsel %vm208, %v199, 0.0
        %v217 = vsel %vm208, %v201, 0.0
        %v218 = vadd.f32 %v216, %v217
        %v219 = vsel %vm208, %v203, 0.0
        %v220 = vadd.f32 %v218, %v219
        %v221 = vsel %vm208, %v205, 0.0
        %v222 = vadd.f32 %v220, %v221
        %v223 = vadd.f32 %v206, %v215
        %v224 = vadd.f32 %v207, %v222
        %225 = vst.msk [vmem:[#allocation2] sm:$0xff] %vm208, %v223
        %226 = vst.msk [vmem:[#allocation2 + $0x8] sm:$0xff] %vm208, %v224
        %v227 = vld [vmem:[#allocation3] sm:$0xff]
        %v228 = vld [vmem:[#allocation3 + $0x8] sm:$0xff]
        %v229 = vsel %vm208, %v198, -inf
        %v230 = vsel %vm208, %v200, -inf
        %v231 = vsel %vm208, %v202, -inf
        %v232 = vmax.f32 %v229, %v231
        %v233 = vsel %vm208, %v204, -inf
        %v234 = vmax.f32 %v230, %v233
        %v235 = vmax.f32 %v232, %v234
        %v236 = vsel %vm208, %v199, -inf
        %v237 = vsel %vm208, %v201, -inf
        %v238 = vsel %vm208, %v203, -inf
        %v239 = vmax.f32 %v236, %v238
        %v240 = vsel %vm208, %v205, -inf
        %v241 = vmax.f32 %v237, %v240
        %v242 = vmax.f32 %v239, %v241
        %v243 = vmax.f32 %v227, %v235
        %v244 = vmax.f32 %v228, %v242
        %245 = vst.msk [vmem:[#allocation3] sm:$0xff] %vm208, %v243
        %246 = vst.msk [vmem:[#allocation3 + $0x8] sm:$0xff] %vm208, %v244
        // Predicated region
        $region37: #{spatial_attention.2} parent=27 // pred_check
          %p247 = pneg %p189
        $region38: #{spatial_attention.2} parent=27 // pred_check_branch
          %249 = sbr.rel (%p247) target = $region40
        $region39: #{spatial_attention.2} parent=27 // pred_region
          %v250 = vld [vmem:[#allocation2] sm:$0xff]
          %v251 = vld [vmem:[#allocation2 + $0x8] sm:$0xff]
          %v252 = vmul.f32 %v250, 0.25
          %v253 = vmul.f32 %v251, 0.25
          %v254 = vld [vmem:[#allocation3] sm:$0xff]
          %v255 = vld [vmem:[#allocation3 + $0x8] sm:$0xff]
          %258 = vrot.lane.b32.xlu0 %v252, 3
          %v259 = vpop.permute.xlu0 %258
          %260 = vrot.lane.b32.xlu0 %v253, 3
          %v261 = vpop.permute.xlu0 %260
          %vm264 = vcmask 23552
          %v265 = vsel %vm264, 0.0, %v259
          %v266 = vsel %vm264, 0.0, %v261
          %267 = vrot.lane.b32.xlu0 %v252, 2
          %v268 = vpop.permute.xlu0 %267
          %269 = vrot.lane.b32.xlu0 %v253, 2
          %v270 = vpop.permute.xlu0 %269
          %vm273 = vcmask 15360
          %v274 = vsel %vm273, 0.0, %v268
          %v275 = vsel %vm273, 0.0, %v270
          %276 = vrot.lane.b32.xlu0 %v252, 1
          %v277 = vpop.permute.xlu0 %276
          %278 = vrot.lane.b32.xlu0 %v253, 1
          %v279 = vpop.permute.xlu0 %278
          %vm282 = vcmask 7168
          %v283 = vsel %vm282, 0.0, %v277
          %v284 = vsel %vm282, 0.0, %v279
          %285 = vrot.lane.b32.xlu0 %v252, 127
          %v286 = vpop.permute.xlu0 %285
          %287 = vrot.lane.b32.xlu0 %v253, 127
          %v288 = vpop.permute.xlu0 %287
          %vm291 = vcmask 121856
          %v292 = vsel %vm291, %v286, 0.0
          %v293 = vsel %vm291, %v288, 0.0
          %294 = vrot.lane.b32.xlu0 %v252, 126
          %v295 = vpop.permute.xlu0 %294
          %296 = vrot.lane.b32.xlu0 %v253, 126
          %v297 = vpop.permute.xlu0 %296
          %vm300 = vcmask 113664
          %v301 = vsel %vm300, %v295, 0.0
          %v302 = vsel %vm300, %v297, 0.0
          %303 = vrot.lane.b32.xlu0 %v252, 125
          %v304 = vpop.permute.xlu0 %303
          %305 = vrot.lane.b32.xlu0 %v253, 125
          %v306 = vpop.permute.xlu0 %305
          %vm309 = vcmask 105472
          %v310 = vsel %vm309, %v304, 0.0
          %v311 = vsel %vm309, %v306, 0.0
          %s312 = sld [smem:[#allocation4]]
          %v313 = vstv %s312
          %v314 = vmul.f32 %v313, %v265
          %v315 = vmul.f32 %v313, %v266
          %v316 = vadd.f32 %v314, 0.0
          %v317 = vadd.f32 %v315, 0.0
          %s318 = sld [smem:[#allocation4 + $0x1]]
          %v319 = vstv %s318
          %v320 = vmul.f32 %v319, %v274
          %v321 = vmul.f32 %v319, %v275
          %v322 = vadd.f32 %v316, %v320
          %v323 = vadd.f32 %v317, %v321
          %s324 = sld [smem:[#allocation4 + $0x2]]
          %v325 = vstv %s324
          %v326 = vmul.f32 %v325, %v283
          %v327 = vmul.f32 %v325, %v284
          %v328 = vadd.f32 %v322, %v326
          %v329 = vadd.f32 %v323, %v327
          %s330 = sld [smem:[#allocation4 + $0x3]]
          %v331 = vstv %s330
          %v332 = vmul.f32 %v331, %v252
          %v333 = vmul.f32 %v331, %v253
          %v334 = vadd.f32 %v328, %v332
          %v335 = vadd.f32 %v329, %v333
          %s336 = sld [smem:[#allocation4 + $0x4]]
          %v337 = vstv %s336
          %v338 = vmul.f32 %v337, %v292
          %v339 = vmul.f32 %v337, %v293
          %v340 = vadd.f32 %v334, %v338
          %v341 = vadd.f32 %v335, %v339
          %s342 = sld [smem:[#allocation4 + $0x5]]
          %v343 = vstv %s342
          %v344 = vmul.f32 %v343, %v301
          %v345 = vmul.f32 %v343, %v302
          %v346 = vadd.f32 %v340, %v344
          %v347 = vadd.f32 %v341, %v345
          %s348 = sld [smem:[#allocation4 + $0x6]]
          %v349 = vstv %s348
          %v350 = vmul.f32 %v349, %v310
          %v351 = vmul.f32 %v349, %v311
          %v352 = vadd.f32 %v346, %v350
          %v353 = vadd.f32 %v347, %v351
          %vm356 = vcmask 1042432
          %v357 = vrot.slane %v352, 5
          %v358 = vrot.slane %v353, 5
          %v359 = vsel %vm356, %v357, %v358
          %v362 = vsel %vm356, 0.0, %v357
          %v363 = vadd.f32 %v362, 0.0
          %v364 = vadd.f32 %v359, 0.0
          %s365 = sld [smem:[#allocation4 + $0x7]]
          %v366 = vstv %s365
          %v367 = vmul.f32 %v366, %v265
          %v368 = vmul.f32 %v366, %v266
          %v369 = vadd.f32 %v367, 0.0
          %v370 = vadd.f32 %v368, 0.0
          %s371 = sld [smem:[#allocation4 + $0x8]]
          %v372 = vstv %s371
          %v373 = vmul.f32 %v372, %v274
          %v374 = vmul.f32 %v372, %v275
          %v375 = vadd.f32 %v369, %v373
          %v376 = vadd.f32 %v370, %v374
          %s377 = sld [smem:[#allocation4 + $0x9]]
          %v378 = vstv %s377
          %v379 = vmul.f32 %v378, %v283
          %v380 = vmul.f32 %v378, %v284
          %v381 = vadd.f32 %v375, %v379
          %v382 = vadd.f32 %v376, %v380
          %s383 = sld [smem:[#allocation4 + $0xa]]
          %v384 = vstv %s383
          %v385 = vmul.f32 %v384, %v252
          %v386 = vmul.f32 %v384, %v253
          %v387 = vadd.f32 %v381, %v385
          %v388 = vadd.f32 %v382, %v386
          %s389 = sld [smem:[#allocation4 + $0xb]]
          %v390 = vstv %s389
          %v391 = vmul.f32 %v390, %v292
          %v392 = vmul.f32 %v390, %v293
          %v393 = vadd.f32 %v387, %v391
          %v394 = vadd.f32 %v388, %v392
          %s395 = sld [smem:[#allocation4 + $0xc]]
          %v396 = vstv %s395
          %v397 = vmul.f32 %v396, %v301
          %v398 = vmul.f32 %v396, %v302
          %v399 = vadd.f32 %v393, %v397
          %v400 = vadd.f32 %v394, %v398
          %s401 = sld [smem:[#allocation4 + $0xd]]
          %v402 = vstv %s401
          %v403 = vmul.f32 %v402, %v310
          %v404 = vmul.f32 %v402, %v311
          %v405 = vadd.f32 %v399, %v403
          %v406 = vadd.f32 %v400, %v404
          %vm409 = vcmask 1041408
          %v410 = vrot.slane %v405, 6
          %v411 = vrot.slane %v406, 6
          %v412 = vsel %vm409, %v410, %v411
          %v415 = vsel %vm409, 0.0, %v410
          %v416 = vadd.f32 %v363, %v415
          %v417 = vadd.f32 %v364, %v412
          %s418 = sld [smem:[#allocation4 + $0xe]]
          %v419 = vstv %s418
          %v420 = vmul.f32 %v419, %v265
          %v421 = vmul.f32 %v419, %v266
          %v422 = vadd.f32 %v420, 0.0
          %v423 = vadd.f32 %v421, 0.0
          %s424 = sld [smem:[#allocation4 + $0xf]]
          %v425 = vstv %s424
          %v426 = vmul.f32 %v425, %v274
          %v427 = vmul.f32 %v425, %v275
          %v428 = vadd.f32 %v422, %v426
          %v429 = vadd.f32 %v423, %v427
          %s430 = sld [smem:[#allocation4 + $0x10]]
          %v431 = vstv %s430
          %v432 = vmul.f32 %v431, %v283
          %v433 = vmul.f32 %v431, %v284
          %v434 = vadd.f32 %v428, %v432
          %v435 = vadd.f32 %v429, %v433
          %s436 = sld [smem:[#allocation4 + $0x11]]
          %v437 = vstv %s436
          %v438 = vmul.f32 %v437, %v252
          %v439 = vmul.f32 %v437, %v253
          %v440 = vadd.f32 %v434, %v438
          %v441 = vadd.f32 %v435, %v439
          %s442 = sld [smem:[#allocation4 + $0x12]]
          %v443 = vstv %s442
          %v444 = vmul.f32 %v443, %v292
          %v445 = vmul.f32 %v443, %v293
          %v446 = vadd.f32 %v440, %v444
          %v447 = vadd.f32 %v441, %v445
          %s448 = sld [smem:[#allocation4 + $0x13]]
          %v449 = vstv %s448
          %v450 = vmul.f32 %v449, %v301
          %v451 = vmul.f32 %v449, %v302
          %v452 = vadd.f32 %v446, %v450
          %v453 = vadd.f32 %v447, %v451
          %s454 = sld [smem:[#allocation4 + $0x14]]
          %v455 = vstv %s454
          %v456 = vmul.f32 %v455, %v310
          %v457 = vmul.f32 %v455, %v311
          %v458 = vadd.f32 %v452, %v456
          %v459 = vadd.f32 %v453, %v457
          %vm462 = vcmask 1040384
          %v463 = vrot.slane %v458, 7
          %v464 = vrot.slane %v459, 7
          %v465 = vsel %vm462, %v463, %v464
          %v468 = vsel %vm462, 0.0, %v463
          %v469 = vadd.f32 %v416, %v468
          %v470 = vadd.f32 %v417, %v465
          %s471 = sld [smem:[#allocation4 + $0x15]]
          %v472 = vstv %s471
          %v473 = vmul.f32 %v472, %v265
          %v474 = vmul.f32 %v472, %v266
          %v475 = vadd.f32 %v473, 0.0
          %v476 = vadd.f32 %v474, 0.0
          %s477 = sld [smem:[#allocation4 + $0x16]]
          %v478 = vstv %s477
          %v479 = vmul.f32 %v478, %v274
          %v480 = vmul.f32 %v478, %v275
          %v481 = vadd.f32 %v475, %v479
          %v482 = vadd.f32 %v476, %v480
          %s483 = sld [smem:[#allocation4 + $0x17]]
          %v484 = vstv %s483
          %v485 = vmul.f32 %v484, %v283
          %v486 = vmul.f32 %v484, %v284
          %v487 = vadd.f32 %v481, %v485
          %v488 = vadd.f32 %v482, %v486
          %s489 = sld [smem:[#allocation4 + $0x18]]
          %v490 = vstv %s489
          %v491 = vmul.f32 %v490, %v252
          %v492 = vmul.f32 %v490, %v253
          %v493 = vadd.f32 %v487, %v491
          %v494 = vadd.f32 %v488, %v492
          %s495 = sld [smem:[#allocation4 + $0x19]]
          %v496 = vstv %s495
          %v497 = vmul.f32 %v496, %v292
          %v498 = vmul.f32 %v496, %v293
          %v499 = vadd.f32 %v493, %v497
          %v500 = vadd.f32 %v494, %v498
          %s501 = sld [smem:[#allocation4 + $0x1a]]
          %v502 = vstv %s501
          %v503 = vmul.f32 %v502, %v301
          %v504 = vmul.f32 %v502, %v302
          %v505 = vadd.f32 %v499, %v503
          %v506 = vadd.f32 %v500, %v504
          %s507 = sld [smem:[#allocation4 + $0x1b]]
          %v508 = vstv %s507
          %v509 = vmul.f32 %v508, %v310
          %v510 = vmul.f32 %v508, %v311
          %v511 = vadd.f32 %v505, %v509
          %v512 = vadd.f32 %v506, %v510
          %v513 = vadd.f32 %v469, %v511
          %v514 = vadd.f32 %v470, %v512
          %s515 = sld [smem:[#allocation4 + $0x1c]]
          %v516 = vstv %s515
          %v517 = vmul.f32 %v516, %v265
          %v518 = vmul.f32 %v516, %v266
          %v519 = vadd.f32 %v517, 0.0
          %v520 = vadd.f32 %v518, 0.0
          %s521 = sld [smem:[#allocation4 + $0x1d]]
          %v522 = vstv %s521
          %v523 = vmul.f32 %v522, %v274
          %v524 = vmul.f32 %v522, %v275
          %v525 = vadd.f32 %v519, %v523
          %v526 = vadd.f32 %v520, %v524
          %s527 = sld [smem:[#allocation4 + $0x1e]]
          %v528 = vstv %s527
          %v529 = vmul.f32 %v528, %v283
          %v530 = vmul.f32 %v528, %v284
          %v531 = vadd.f32 %v525, %v529
          %v532 = vadd.f32 %v526, %v530
          %s533 = sld [smem:[#allocation4 + $0x1f]]
          %v534 = vstv %s533
          %v535 = vmul.f32 %v534, %v252
          %v536 = vmul.f32 %v534, %v253
          %v537 = vadd.f32 %v531, %v535
          %v538 = vadd.f32 %v532, %v536
          %s539 = sld [smem:[#allocation4 + $0x20]]
          %v540 = vstv %s539
          %v541 = vmul.f32 %v540, %v292
          %v542 = vmul.f32 %v540, %v293
          %v543 = vadd.f32 %v537, %v541
          %v544 = vadd.f32 %v538, %v542
          %s545 = sld [smem:[#allocation4 + $0x21]]
          %v546 = vstv %s545
          %v547 = vmul.f32 %v546, %v301
          %v548 = vmul.f32 %v546, %v302
          %v549 = vadd.f32 %v543, %v547
          %v550 = vadd.f32 %v544, %v548
          %s551 = sld [smem:[#allocation4 + $0x22]]
          %v552 = vstv %s551
          %v553 = vmul.f32 %v552, %v310
          %v554 = vmul.f32 %v552, %v311
          %v555 = vadd.f32 %v549, %v553
          %v556 = vadd.f32 %v550, %v554
          %vm559 = vcmask 1046528
          %v560 = vrot.slane %v555, 1
          %v561 = vrot.slane %v556, 1
          %v562 = vsel %vm559, %v560, %v561
          %v565 = vsel %vm559, %v561, 0.0
          %v566 = vadd.f32 %v513, %v562
          %v567 = vadd.f32 %v514, %v565
          %s568 = sld [smem:[#allocation4 + $0x23]]
          %v569 = vstv %s568
          %v570 = vmul.f32 %v569, %v265
          %v571 = vmul.f32 %v569, %v266
          %v572 = vadd.f32 %v570, 0.0
          %v573 = vadd.f32 %v571, 0.0
          %s574 = sld [smem:[#allocation4 + $0x24]]
          %v575 = vstv %s574
          %v576 = vmul.f32 %v575, %v274
          %v577 = vmul.f32 %v575, %v275
          %v578 = vadd.f32 %v572, %v576
          %v579 = vadd.f32 %v573, %v577
          %s580 = sld [smem:[#allocation4 + $0x25]]
          %v581 = vstv %s580
          %v582 = vmul.f32 %v581, %v283
          %v583 = vmul.f32 %v581, %v284
          %v584 = vadd.f32 %v578, %v582
          %v585 = vadd.f32 %v579, %v583
          %s586 = sld [smem:[#allocation4 + $0x26]]
          %v587 = vstv %s586
          %v588 = vmul.f32 %v587, %v252
          %v589 = vmul.f32 %v587, %v253
          %v590 = vadd.f32 %v584, %v588
          %v591 = vadd.f32 %v585, %v589
          %s592 = sld [smem:[#allocation4 + $0x27]]
          %v593 = vstv %s592
          %v594 = vmul.f32 %v593, %v292
          %v595 = vmul.f32 %v593, %v293
          %v596 = vadd.f32 %v590, %v594
          %v597 = vadd.f32 %v591, %v595
          %s598 = sld [smem:[#allocation4 + $0x28]]
          %v599 = vstv %s598
          %v600 = vmul.f32 %v599, %v301
          %v601 = vmul.f32 %v599, %v302
          %v602 = vadd.f32 %v596, %v600
          %v603 = vadd.f32 %v597, %v601
          %s604 = sld [smem:[#allocation4 + $0x29]]
          %v605 = vstv %s604
          %v606 = vmul.f32 %v605, %v310
          %v607 = vmul.f32 %v605, %v311
          %v608 = vadd.f32 %v602, %v606
          %v609 = vadd.f32 %v603, %v607
          %vm612 = vcmask 1045504
          %v613 = vrot.slane %v608, 2
          %v614 = vrot.slane %v609, 2
          %v615 = vsel %vm612, %v613, %v614
          %v618 = vsel %vm612, %v614, 0.0
          %v619 = vadd.f32 %v566, %v615
          %v620 = vadd.f32 %v567, %v618
          %s621 = sld [smem:[#allocation4 + $0x2a]]
          %v622 = vstv %s621
          %v623 = vmul.f32 %v622, %v265
          %v624 = vmul.f32 %v622, %v266
          %v625 = vadd.f32 %v623, 0.0
          %v626 = vadd.f32 %v624, 0.0
          %s627 = sld [smem:[#allocation4 + $0x2b]]
          %v628 = vstv %s627
          %v629 = vmul.f32 %v628, %v274
          %v630 = vmul.f32 %v628, %v275
          %v631 = vadd.f32 %v625, %v629
          %v632 = vadd.f32 %v626, %v630
          %s633 = sld [smem:[#allocation4 + $0x2c]]
          %v634 = vstv %s633
          %v635 = vmul.f32 %v634, %v283
          %v636 = vmul.f32 %v634, %v284
          %v637 = vadd.f32 %v631, %v635
          %v638 = vadd.f32 %v632, %v636
          %s639 = sld [smem:[#allocation4 + $0x2d]]
          %v640 = vstv %s639
          %v641 = vmul.f32 %v640, %v252
          %v642 = vmul.f32 %v640, %v253
          %v643 = vadd.f32 %v637, %v641
          %v644 = vadd.f32 %v638, %v642
          %s645 = sld [smem:[#allocation4 + $0x2e]]
          %v646 = vstv %s645
          %v647 = vmul.f32 %v646, %v292
          %v648 = vmul.f32 %v646, %v293
          %v649 = vadd.f32 %v643, %v647
          %v650 = vadd.f32 %v644, %v648
          %s651 = sld [smem:[#allocation4 + $0x2f]]
          %v652 = vstv %s651
          %v653 = vmul.f32 %v652, %v301
          %v654 = vmul.f32 %v652, %v302
          %v655 = vadd.f32 %v649, %v653
          %v656 = vadd.f32 %v650, %v654
          %s657 = sld [smem:[#allocation4 + $0x30]]
          %v658 = vstv %s657
          %v659 = vmul.f32 %v658, %v310
          %v660 = vmul.f32 %v658, %v311
          %v661 = vadd.f32 %v655, %v659
          %v662 = vadd.f32 %v656, %v660
          %vm665 = vcmask 1044480
          %v666 = vrot.slane %v661, 3
          %v667 = vrot.slane %v662, 3
          %v668 = vsel %vm665, %v666, %v667
          %v671 = vsel %vm665, %v667, 0.0
          %v672 = vadd.f32 %v619, %v668
          %v673 = vadd.f32 %v620, %v671
          %676 = vrot.lane.b32.xlu0 %v254, 3
          %v677 = vpop.permute.xlu0 %676
          %678 = vrot.lane.b32.xlu0 %v255, 3
          %v679 = vpop.permute.xlu0 %678
          %v682 = vsel %vm264, 0.0, %v677
          %v683 = vsel %vm264, 0.0, %v679
          %684 = vrot.lane.b32.xlu0 %v254, 2
          %v685 = vpop.permute.xlu0 %684
          %686 = vrot.lane.b32.xlu0 %v255, 2
          %v687 = vpop.permute.xlu0 %686
          %v690 = vsel %vm273, 0.0, %v685
          %v691 = vsel %vm273, 0.0, %v687
          %692 = vrot.lane.b32.xlu0 %v254, 1
          %v693 = vpop.permute.xlu0 %692
          %694 = vrot.lane.b32.xlu0 %v255, 1
          %v695 = vpop.permute.xlu0 %694
          %v698 = vsel %vm282, 0.0, %v693
          %v699 = vsel %vm282, 0.0, %v695
          %700 = vrot.lane.b32.xlu0 %v254, 127
          %v701 = vpop.permute.xlu0 %700
          %702 = vrot.lane.b32.xlu0 %v255, 127
          %v703 = vpop.permute.xlu0 %702
          %v706 = vsel %vm291, %v701, 0.0
          %v707 = vsel %vm291, %v703, 0.0
          %708 = vrot.lane.b32.xlu0 %v254, 126
          %v709 = vpop.permute.xlu0 %708
          %710 = vrot.lane.b32.xlu0 %v255, 126
          %v711 = vpop.permute.xlu0 %710
          %v714 = vsel %vm300, %v709, 0.0
          %v715 = vsel %vm300, %v711, 0.0
          %716 = vrot.lane.b32.xlu0 %v254, 125
          %v717 = vpop.permute.xlu0 %716
          %718 = vrot.lane.b32.xlu0 %v255, 125
          %v719 = vpop.permute.xlu0 %718
          %v722 = vsel %vm309, %v717, 0.0
          %v723 = vsel %vm309, %v719, 0.0
          %s724 = sld [smem:[#allocation4 + $0x80]]
          %v725 = vstv %s724
          %v726 = vmul.f32 %v725, %v682
          %v727 = vmul.f32 %v725, %v683
          %v728 = vadd.f32 %v726, 0.0
          %v729 = vadd.f32 %v727, 0.0
          %s730 = sld [smem:[#allocation4 + $0x81]]
          %v731 = vstv %s730
          %v732 = vmul.f32 %v731, %v690
          %v733 = vmul.f32 %v731, %v691
          %v734 = vadd.f32 %v728, %v732
          %v735 = vadd.f32 %v729, %v733
          %s736 = sld [smem:[#allocation4 + $0x82]]
          %v737 = vstv %s736
          %v738 = vmul.f32 %v737, %v698
          %v739 = vmul.f32 %v737, %v699
          %v740 = vadd.f32 %v734, %v738
          %v741 = vadd.f32 %v735, %v739
          %s742 = sld [smem:[#allocation4 + $0x83]]
          %v743 = vstv %s742
          %v744 = vmul.f32 %v743, %v254
          %v745 = vmul.f32 %v743, %v255
          %v746 = vadd.f32 %v740, %v744
          %v747 = vadd.f32 %v741, %v745
          %s748 = sld [smem:[#allocation4 + $0x84]]
          %v749 = vstv %s748
          %v750 = vmul.f32 %v749, %v706
          %v751 = vmul.f32 %v749, %v707
          %v752 = vadd.f32 %v746, %v750
          %v753 = vadd.f32 %v747, %v751
          %s754 = sld [smem:[#allocation4 + $0x85]]
          %v755 = vstv %s754
          %v756 = vmul.f32 %v755, %v714
          %v757 = vmul.f32 %v755, %v715
          %v758 = vadd.f32 %v752, %v756
          %v759 = vadd.f32 %v753, %v757
          %s760 = sld [smem:[#allocation4 + $0x86]]
          %v761 = vstv %s760
          %v762 = vmul.f32 %v761, %v722
          %v763 = vmul.f32 %v761, %v723
          %v764 = vadd.f32 %v758, %v762
          %v765 = vadd.f32 %v759, %v763
          %v768 = vrot.slane %v764, 5
          %v769 = vrot.slane %v765, 5
          %v770 = vsel %vm356, %v768, %v769
          %v773 = vsel %vm356, 0.0, %v768
          %v774 = vadd.f32 %v672, %v773
          %v775 = vadd.f32 %v673, %v770
          %s776 = sld [smem:[#allocation4 + $0x87]]
          %v777 = vstv %s776
          %v778 = vmul.f32 %v777, %v682
          %v779 = vmul.f32 %v777, %v683
          %v780 = vadd.f32 %v778, 0.0
          %v781 = vadd.f32 %v779, 0.0
          %s782 = sld [smem:[#allocation4 + $0x88]]
          %v783 = vstv %s782
          %v784 = vmul.f32 %v783, %v690
          %v785 = vmul.f32 %v783, %v691
          %v786 = vadd.f32 %v780, %v784
          %v787 = vadd.f32 %v781, %v785
          %s788 = sld [smem:[#allocation4 + $0x89]]
          %v789 = vstv %s788
          %v790 = vmul.f32 %v789, %v698
          %v791 = vmul.f32 %v789, %v699
          %v792 = vadd.f32 %v786, %v790
          %v793 = vadd.f32 %v787, %v791
          %s794 = sld [smem:[#allocation4 + $0x8a]]
          %v795 = vstv %s794
          %v796 = vmul.f32 %v795, %v254
          %v797 = vmul.f32 %v795, %v255
          %v798 = vadd.f32 %v792, %v796
          %v799 = vadd.f32 %v793, %v797
          %s800 = sld [smem:[#allocation4 + $0x8b]]
          %v801 = vstv %s800
          %v802 = vmul.f32 %v801, %v706
          %v803 = vmul.f32 %v801, %v707
          %v804 = vadd.f32 %v798, %v802
          %v805 = vadd.f32 %v799, %v803
          %s806 = sld [smem:[#allocation4 + $0x8c]]
          %v807 = vstv %s806
          %v808 = vmul.f32 %v807, %v714
          %v809 = vmul.f32 %v807, %v715
          %v810 = vadd.f32 %v804, %v808
          %v811 = vadd.f32 %v805, %v809
          %s812 = sld [smem:[#allocation4 + $0x8d]]
          %v813 = vstv %s812
          %v814 = vmul.f32 %v813, %v722
          %v815 = vmul.f32 %v813, %v723
          %v816 = vadd.f32 %v810, %v814
          %v817 = vadd.f32 %v811, %v815
          %v820 = vrot.slane %v816, 6
          %v821 = vrot.slane %v817, 6
          %v822 = vsel %vm409, %v820, %v821
          %v825 = vsel %vm409, 0.0, %v820
          %v826 = vadd.f32 %v774, %v825
          %v827 = vadd.f32 %v775, %v822
          %s828 = sld [smem:[#allocation4 + $0x8e]]
          %v829 = vstv %s828
          %v830 = vmul.f32 %v829, %v682
          %v831 = vmul.f32 %v829, %v683
          %v832 = vadd.f32 %v830, 0.0
          %v833 = vadd.f32 %v831, 0.0
          %s834 = sld [smem:[#allocation4 + $0x8f]]
          %v835 = vstv %s834
          %v836 = vmul.f32 %v835, %v690
          %v837 = vmul.f32 %v835, %v691
          %v838 = vadd.f32 %v832, %v836
          %v839 = vadd.f32 %v833, %v837
          %s840 = sld [smem:[#allocation4 + $0x90]]
          %v841 = vstv %s840
          %v842 = vmul.f32 %v841, %v698
          %v843 = vmul.f32 %v841, %v699
          %v844 = vadd.f32 %v838, %v842
          %v845 = vadd.f32 %v839, %v843
          %s846 = sld [smem:[#allocation4 + $0x91]]
          %v847 = vstv %s846
          %v848 = vmul.f32 %v847, %v254
          %v849 = vmul.f32 %v847, %v255
          %v850 = vadd.f32 %v844, %v848
          %v851 = vadd.f32 %v845, %v849
          %s852 = sld [smem:[#allocation4 + $0x92]]
          %v853 = vstv %s852
          %v854 = vmul.f32 %v853, %v706
          %v855 = vmul.f32 %v853, %v707
          %v856 = vadd.f32 %v850, %v854
          %v857 = vadd.f32 %v851, %v855
          %s858 = sld [smem:[#allocation4 + $0x93]]
          %v859 = vstv %s858
          %v860 = vmul.f32 %v859, %v714
          %v861 = vmul.f32 %v859, %v715
          %v862 = vadd.f32 %v856, %v860
          %v863 = vadd.f32 %v857, %v861
          %s864 = sld [smem:[#allocation4 + $0x94]]
          %v865 = vstv %s864
          %v866 = vmul.f32 %v865, %v722
          %v867 = vmul.f32 %v865, %v723
          %v868 = vadd.f32 %v862, %v866
          %v869 = vadd.f32 %v863, %v867
          %v872 = vrot.slane %v868, 7
          %v873 = vrot.slane %v869, 7
          %v874 = vsel %vm462, %v872, %v873
          %v877 = vsel %vm462, 0.0, %v872
          %v878 = vadd.f32 %v826, %v877
          %v879 = vadd.f32 %v827, %v874
          %s880 = sld [smem:[#allocation4 + $0x95]]
          %v881 = vstv %s880
          %v882 = vmul.f32 %v881, %v682
          %v883 = vmul.f32 %v881, %v683
          %v884 = vadd.f32 %v882, 0.0
          %v885 = vadd.f32 %v883, 0.0
          %s886 = sld [smem:[#allocation4 + $0x96]]
          %v887 = vstv %s886
          %v888 = vmul.f32 %v887, %v690
          %v889 = vmul.f32 %v887, %v691
          %v890 = vadd.f32 %v884, %v888
          %v891 = vadd.f32 %v885, %v889
          %s892 = sld [smem:[#allocation4 + $0x97]]
          %v893 = vstv %s892
          %v894 = vmul.f32 %v893, %v698
          %v895 = vmul.f32 %v893, %v699
          %v896 = vadd.f32 %v890, %v894
          %v897 = vadd.f32 %v891, %v895
          %s898 = sld [smem:[#allocation4 + $0x98]]
          %v899 = vstv %s898
          %v900 = vmul.f32 %v899, %v254
          %v901 = vmul.f32 %v899, %v255
          %v902 = vadd.f32 %v896, %v900
          %v903 = vadd.f32 %v897, %v901
          %s904 = sld [smem:[#allocation4 + $0x99]]
          %v905 = vstv %s904
          %v906 = vmul.f32 %v905, %v706
          %v907 = vmul.f32 %v905, %v707
          %v908 = vadd.f32 %v902, %v906
          %v909 = vadd.f32 %v903, %v907
          %s910 = sld [smem:[#allocation4 + $0x9a]]
          %v911 = vstv %s910
          %v912 = vmul.f32 %v911, %v714
          %v913 = vmul.f32 %v911, %v715
          %v914 = vadd.f32 %v908, %v912
          %v915 = vadd.f32 %v909, %v913
          %s916 = sld [smem:[#allocation4 + $0x9b]]
          %v917 = vstv %s916
          %v918 = vmul.f32 %v917, %v722
          %v919 = vmul.f32 %v917, %v723
          %v920 = vadd.f32 %v914, %v918
          %v921 = vadd.f32 %v915, %v919
          %v922 = vadd.f32 %v878, %v920
          %v923 = vadd.f32 %v879, %v921
          %s924 = sld [smem:[#allocation4 + $0x9c]]
          %v925 = vstv %s924
          %v926 = vmul.f32 %v925, %v682
          %v927 = vmul.f32 %v925, %v683
          %v928 = vadd.f32 %v926, 0.0
          %v929 = vadd.f32 %v927, 0.0
          %s930 = sld [smem:[#allocation4 + $0x9d]]
          %v931 = vstv %s930
          %v932 = vmul.f32 %v931, %v690
          %v933 = vmul.f32 %v931, %v691
          %v934 = vadd.f32 %v928, %v932
          %v935 = vadd.f32 %v929, %v933
          %s936 = sld [smem:[#allocation4 + $0x9e]]
          %v937 = vstv %s936
          %v938 = vmul.f32 %v937, %v698
          %v939 = vmul.f32 %v937, %v699
          %v940 = vadd.f32 %v934, %v938
          %v941 = vadd.f32 %v935, %v939
          %s942 = sld [smem:[#allocation4 + $0x9f]]
          %v943 = vstv %s942
          %v944 = vmul.f32 %v943, %v254
          %v945 = vmul.f32 %v943, %v255
          %v946 = vadd.f32 %v940, %v944
          %v947 = vadd.f32 %v941, %v945
          %s948 = sld [smem:[#allocation4 + $0xa0]]
          %v949 = vstv %s948
          %v950 = vmul.f32 %v949, %v706
          %v951 = vmul.f32 %v949, %v707
          %v952 = vadd.f32 %v946, %v950
          %v953 = vadd.f32 %v947, %v951
          %s954 = sld [smem:[#allocation4 + $0xa1]]
          %v955 = vstv %s954
          %v956 = vmul.f32 %v955, %v714
          %v957 = vmul.f32 %v955, %v715
          %v958 = vadd.f32 %v952, %v956
          %v959 = vadd.f32 %v953, %v957
          %s960 = sld [smem:[#allocation4 + $0xa2]]
          %v961 = vstv %s960
          %v962 = vmul.f32 %v961, %v722
          %v963 = vmul.f32 %v961, %v723
          %v964 = vadd.f32 %v958, %v962
          %v965 = vadd.f32 %v959, %v963
          %v968 = vrot.slane %v964, 1
          %v969 = vrot.slane %v965, 1
          %v970 = vsel %vm559, %v968, %v969
          %v973 = vsel %vm559, %v969, 0.0
          %v974 = vadd.f32 %v922, %v970
          %v975 = vadd.f32 %v923, %v973
          %s976 = sld [smem:[#allocation4 + $0xa3]]
          %v977 = vstv %s976
          %v978 = vmul.f32 %v977, %v682
          %v979 = vmul.f32 %v977, %v683
          %v980 = vadd.f32 %v978, 0.0
          %v981 = vadd.f32 %v979, 0.0
          %s982 = sld [smem:[#allocation4 + $0xa4]]
          %v983 = vstv %s982
          %v984 = vmul.f32 %v983, %v690
          %v985 = vmul.f32 %v983, %v691
          %v986 = vadd.f32 %v980, %v984
          %v987 = vadd.f32 %v981, %v985
          %s988 = sld [smem:[#allocation4 + $0xa5]]
          %v989 = vstv %s988
          %v990 = vmul.f32 %v989, %v698
          %v991 = vmul.f32 %v989, %v699
          %v992 = vadd.f32 %v986, %v990
          %v993 = vadd.f32 %v987, %v991
          %s994 = sld [smem:[#allocation4 + $0xa6]]
          %v995 = vstv %s994
          %v996 = vmul.f32 %v995, %v254
          %v997 = vmul.f32 %v995, %v255
          %v998 = vadd.f32 %v992, %v996
          %v999 = vadd.f32 %v993, %v997
          %s1000 = sld [smem:[#allocation4 + $0xa7]]
          %v1001 = vstv %s1000
          %v1002 = vmul.f32 %v1001, %v706
          %v1003 = vmul.f32 %v1001, %v707
          %v1004 = vadd.f32 %v998, %v1002
          %v1005 = vadd.f32 %v999, %v1003
          %s1006 = sld [smem:[#allocation4 + $0xa8]]
          %v1007 = vstv %s1006
          %v1008 = vmul.f32 %v1007, %v714
          %v1009 = vmul.f32 %v1007, %v715
          %v1010 = vadd.f32 %v1004, %v1008
          %v1011 = vadd.f32 %v1005, %v1009
          %s1012 = sld [smem:[#allocation4 + $0xa9]]
          %v1013 = vstv %s1012
          %v1014 = vmul.f32 %v1013, %v722
          %v1015 = vmul.f32 %v1013, %v723
          %v1016 = vadd.f32 %v1010, %v1014
          %v1017 = vadd.f32 %v1011, %v1015
          %v1020 = vrot.slane %v1016, 2
          %v1021 = vrot.slane %v1017, 2
          %v1022 = vsel %vm612, %v1020, %v1021
          %v1025 = vsel %vm612, %v1021, 0.0
          %v1026 = vadd.f32 %v974, %v1022
          %v1027 = vadd.f32 %v975, %v1025
          %s1028 = sld [smem:[#allocation4 + $0xaa]]
          %v1029 = vstv %s1028
          %v1030 = vmul.f32 %v1029, %v682
          %v1031 = vmul.f32 %v1029, %v683
          %v1032 = vadd.f32 %v1030, 0.0
          %v1033 = vadd.f32 %v1031, 0.0
          %s1034 = sld [smem:[#allocation4 + $0xab]]
          %v1035 = vstv %s1034
          %v1036 = vmul.f32 %v1035, %v690
          %v1037 = vmul.f32 %v1035, %v691
          %v1038 = vadd.f32 %v1032, %v1036
          %v1039 = vadd.f32 %v1033, %v1037
          %s1040 = sld [smem:[#allocation4 + $0xac]]
          %v1041 = vstv %s1040
          %v1042 = vmul.f32 %v1041, %v698
          %v1043 = vmul.f32 %v1041, %v699
          %v1044 = vadd.f32 %v1038, %v1042
          %v1045 = vadd.f32 %v1039, %v1043
          %s1046 = sld [smem:[#allocation4 + $0xad]]
          %v1047 = vstv %s1046
          %v1048 = vmul.f32 %v1047, %v254
          %v1049 = vmul.f32 %v1047, %v255
          %v1050 = vadd.f32 %v1044, %v1048
          %v1051 = vadd.f32 %v1045, %v1049
          %s1052 = sld [smem:[#allocation4 + $0xae]]
          %v1053 = vstv %s1052
          %v1054 = vmul.f32 %v1053, %v706
          %v1055 = vmul.f32 %v1053, %v707
          %v1056 = vadd.f32 %v1050, %v1054
          %v1057 = vadd.f32 %v1051, %v1055
          %s1058 = sld [smem:[#allocation4 + $0xaf]]
          %v1059 = vstv %s1058
          %v1060 = vmul.f32 %v1059, %v714
          %v1061 = vmul.f32 %v1059, %v715
          %v1062 = vadd.f32 %v1056, %v1060
          %v1063 = vadd.f32 %v1057, %v1061
          %s1064 = sld [smem:[#allocation4 + $0xb0]]
          %v1065 = vstv %s1064
          %v1066 = vmul.f32 %v1065, %v722
          %v1067 = vmul.f32 %v1065, %v723
          %v1068 = vadd.f32 %v1062, %v1066
          %v1069 = vadd.f32 %v1063, %v1067
          %v1072 = vrot.slane %v1068, 3
          %v1073 = vrot.slane %v1069, 3
          %v1074 = vsel %vm665, %v1072, %v1073
          %v1077 = vsel %vm665, %v1073, 0.0
          %v1078 = vadd.f32 %v1026, %v1074
          %v1079 = vadd.f32 %v1027, %v1077
          %v1080 = vxor.u32 %v1078, 2147483648
          %v1081 = vxor.u32 %v1079, 2147483648
          %v1082 = vmul.f32 %v1080, 1.442695
          %v1083 = vpow.pop %v1082
          %v1084 = vmul.f32 %v1081, 1.442695
          %v1085 = vpow.pop %v1084
          %v1086 = vadd.f32 %v1083, 1.0
          %v1087 = vadd.f32 %v1085, 1.0
          %v1088 = vrcp.pop %v1086
          %v1089 = vmul.f32 1.0, %v1088
          %v1090 = vrcp.pop %v1087
          %v1091 = vmul.f32 1.0, %v1090
          %1092 = vst.msk [vmem:[%s188] sm:$0xff] %vm208, %v1089
          %1093 = vst.msk [vmem:[%s188 + $0x8] sm:$0xff] %vm208, %v1091
        $region40: #{spatial_attention.2} parent=27 // pred_fallthru
          _
        %p1094 = scmp.lt.s32.totalorder %s18, 1
        %s1095 = scalar_select %p1094, %s18, 1
        %s1096 = smul.addr %s1095, 2
        %s1097 = smul.addr %s1096, 8
        %s1098 = scalar_lea.vmem %s2, %s1097
        // Predicated region
        $region41: #{spatial_attention.2} parent=27 // pred_check
          %p1099 = pneg %p93
        $region42: #{spatial_attention.2} parent=27 // pred_check_branch
          %1101 = sbr.rel (%p1099) target = $region44
        $region43: #{spatial_attention.2} parent=27 // pred_region
          _
        $region44: #{spatial_attention.2} parent=27 // pred_fallthru
          _
      $region28: #{spatial_attention.2} parent=5 // pred_fallthru
        _
      %p1102 = scmp.le.s32.totalorder 2, %s9
      // Predicated region
      $region45: #{spatial_attention.2} parent=5 // pred_check
        %p1103 = pneg %p1102
      $region46: #{spatial_attention.2} parent=5 // pred_check_branch
        %1105 = sbr.rel (%p1103) target = $region48
      $region47: #{spatial_attention.2} parent=5 // pred_region
        %s1106 = ssub.s32 %s9, 2
        // Predicated region
        $region49: #{spatial_attention.2} parent=47 // pred_check
          %p1107 = pneg %p99
        $region50: #{spatial_attention.2} parent=47 // pred_check_branch
          %1109 = sbr.rel (%p1107) target = $region52
        $region51: #{spatial_attention.2} parent=47 // pred_region
          %p1110 = scmp.lt.s32.totalorder %s20, 1
          %s1111 = scalar_select %p1110, %s20, 1
          %s1112 = smul.addr %s1111, 2
          %s1113 = smul.addr %s1112, 8
          %s1114 = scalar_lea.vmem %s2, %s1113
        $region52: #{spatial_attention.2} parent=47 // pred_fallthru
          _
      $region48: #{spatial_attention.2} parent=5 // pred_fallthru
        _
    $region6: #{spatial_attention.2} parent=1 // loop_footer
      %s13 = sadd.s32 1, %s9
    $region7: #{spatial_attention.2} parent=1 // loop_footer_branch
      %8 = sbr.rel target = $region3
    $region8: #{spatial_attention.2} parent=1 // loop_exit
      _
    %1115 = vsyncpa [#allocation5], 1
    %s1116 = scalar_lea.sflag [#allocation5], 1
    %1117 = vsyncpa %s1116, 1

</llo_original>
